<compile_context>
chip_gen: v6e
topology: v6e:2x2x1
jax: 0.10.0
libtpu: 0.0.40
codegen_flags: <defaults>
</compile_context>

<pallas_src>
import functools

import jax
import jax.numpy as jnp
from jax import lax
from jax.experimental import pallas as pl
from jax.experimental.pallas import tpu as pltpu


def _round_up(x, m):
    return (x + m - 1) // m * m


def _pick_tile(n, pref):
    """Largest multiple of 128 <= pref that divides n, else the full dim."""
    if n <= pref:
        return n
    t = (pref // 128) * 128
    while t >= 128:
        if n % t == 0:
            return t
        t -= 128
    return n


def _largest_divisor_leq(n, cap):
    for d in range(min(n, cap), 0, -1):
        if n % d == 0:
            return d
    return 1


# ---------------------------------------------------------------------------
# 1) QKV projection: K-tiled matmul + bias
# ---------------------------------------------------------------------------
def _qkv_linear_kernel(x_ref, w_ref, b_ref, o_ref, acc_ref):
    k = pl.program_id(2)

    @pl.when(k == 0)
    def _():
        acc_ref[...] = jnp.zeros_like(acc_ref)

    acc_ref[...] += jnp.dot(x_ref[...], w_ref[...],
                            preferred_element_type=jnp.float32)

    @pl.when(k == pl.num_programs(2) - 1)
    def _():
        o_ref[...] = (acc_ref[...] + b_ref[...].astype(jnp.float32)).astype(o_ref.dtype)


def _qkv_linear(x, w, b, out_dtype, *, tm, tn, tk):
    M, K = x.shape
    _, N = w.shape
    assert M % tm == 0 and N % tn == 0 and K % tk == 0
    grid = (M // tm, N // tn, K // tk)
    return pl.pallas_call(
        _qkv_linear_kernel,
        out_shape=jax.ShapeDtypeStruct((M, N), out_dtype),
        grid_spec=pltpu.PrefetchScalarGridSpec(
            num_scalar_prefetch=0,
            grid=grid,
            in_specs=[
                pl.BlockSpec((tm, tk), lambda i, j, k: (i, k)),   # activations
                pl.BlockSpec((tk, tn), lambda i, j, k: (k, j)),   # weights (streamed)
                pl.BlockSpec((1, tn), lambda i, j, k: (0, j)),    # bias
            ],
            out_specs=pl.BlockSpec((tm, tn), lambda i, j, k: (i, j)),
            scratch_shapes=[pltpu.VMEM((tm, tn), jnp.float32)],
        ),
        compiler_params=pltpu.CompilerParams(
            dimension_semantics=("parallel", "parallel", "arbitrary"),
        ),
    )(x, w, b)


# ---------------------------------------------------------------------------
# 2) fused "split + neox RoPE + relayout to head-major" pass
#    (hoists RoPE out of the attention loop and replaces the XLA transposes)
# ---------------------------------------------------------------------------
def _rope_split_kernel(cos_ref, sin_ref, x_ref, o_ref, *, n_rope_heads, half):
    h = pl.program_id(1)

    @pl.when(h < n_rope_heads)          # Q and K heads: apply RoPE
    def _():
        x = x_ref[...].astype(jnp.float32)
        r = x * cos_ref[...] + pltpu.roll(x, shift=half, axis=1) * sin_ref[...]
        o_ref[0] = r.astype(o_ref.dtype)

    @pl.when(h >= n_rope_heads)         # V heads: pass through
    def _():
        o_ref[0] = x_ref[...].astype(o_ref.dtype)


def _rope_split(qkv, cos_f, sin_f, *, num_heads, num_kv_heads, head_dim,
                tokens_tile, out_dtype):
    S_pad, _ = qkv.shape
    n_total = num_heads + 2 * num_kv_heads
    n_rope = num_heads + num_kv_heads
    grid = (S_pad // tokens_tile, n_total)
    kernel = functools.partial(_rope_split_kernel,
                               n_rope_heads=n_rope, half=head_dim // 2)
    return pl.pallas_call(
        kernel,
        out_shape=jax.ShapeDtypeStruct((n_total, S_pad, head_dim), out_dtype),
        grid_spec=pltpu.PrefetchScalarGridSpec(
            num_scalar_prefetch=0,
            grid=grid,
            in_specs=[
                pl.BlockSpec((tokens_tile, head_dim), lambda i, h: (i, 0)),  # cos
                pl.BlockSpec((tokens_tile, head_dim), lambda i, h: (i, 0)),  # sin
                pl.BlockSpec((tokens_tile, head_dim), lambda i, h: (i, h)),  # qkv column strip
            ],
            out_specs=pl.BlockSpec((1, tokens_tile, head_dim), lambda i, h: (h, i, 0)),
        ),
        compiler_params=pltpu.CompilerParams(
            dimension_semantics=("parallel", "parallel"),
        ),
    )(cos_f, sin_f, qkv)


# ---------------------------------------------------------------------------
# 3) causal flash attention, GQA group batched per kv-head
# ---------------------------------------------------------------------------
def _flash_kernel(q_ref, k_ref, v_ref, o_ref, m_sc, l_sc, acc_sc, *,
                  seq_len, tq, tk, group, compute_dtype):
    i = pl.program_id(0)   # query tile
    j = pl.program_id(2)   # kv tile (innermost reduction axis)

    @pl.when(j == 0)
    def _():
        m_sc[...] = jnp.full_like(m_sc, -1e30)
        l_sc[...] = jnp.zeros_like(l_sc)
        acc_sc[...] = jnp.zeros_like(acc_sc)

    def update(apply_mask):
        k = k_ref[0]                                   # (tk, D) shared by the whole group
        v = v_ref[0]                                   # (tk, D)
        if apply_mask:
            q_pos = i * tq + lax.broadcasted_iota(jnp.int32, (tq, tk), 0)
            k_pos = j * tk + lax.broadcasted_iota(jnp.int32, (tq, tk), 1)
            mask = (k_pos <= q_pos) & (k_pos < seq_len)
        for g in range(group):                         # static unroll over the GQA group
            q = q_ref[g]                               # (tq, D), RoPE'd + pre-scaled
            s = lax.dot_general(q, k, (((1,), (1,)), ((), ())),
                                preferred_element_type=jnp.float32)    # (tq, tk)
            if apply_mask:
                s = jnp.where(mask, s, -1e30)
            m_prev = m_sc[g]
            m_new = jnp.maximum(m_prev, s.max(axis=-1, keepdims=True))
            alpha = jnp.exp(m_prev - m_new)
            p = jnp.exp(s - m_new)                     # masked entries underflow to 0
            l_sc[g] = alpha * l_sc[g] + p.sum(axis=-1, keepdims=True)
            acc_sc[g] = alpha * acc_sc[g] + jnp.dot(
                p.astype(compute_dtype), v, preferred_element_type=jnp.float32)
            m_sc[g] = m_new

    below = j * tk + (tk - 1) < i * tq                              # strictly below diagonal
    crossing = (j * tk <= i * tq + (tq - 1)) & jnp.logical_not(below)  # touches diagonal/padding

    @pl.when(below)       # no mask needed
    def _():
        update(apply_mask=False)

    @pl.when(crossing)    # causal + padded-key mask
    def _():
        update(apply_mask=True)

    @pl.when(j == pl.num_programs(2) - 1)
    def _():
        inv_l = pl.reciprocal(l_sc[...], approx=True)
        o_ref[...] = (acc_sc[...] * inv_l).astype(o_ref.dtype)


def _flash_attention(qkv_hm, *, num_heads, num_kv_heads, head_dim, seq_len,
                     tq, tk, compute_dtype):
    n_total, S_pad, D = qkv_hm.shape
    group = num_heads // num_kv_heads
    grid = (S_pad // tq, num_kv_heads, S_pad // tk)   # large parallel axis first (megacore)

    def q_map(i, h, j):
        return (h, i, 0)

    def kv_map_offset(off):
        def kv_map(i, h, j):
            # Clamp to the causal diagonal so tiles above it re-use the resident block
            # (no DMA); compute for them is skipped inside the kernel.
            jc = jnp.minimum(j, (i * tq + (tq - 1)) // tk)
            return (off + h, jc, 0)
        return kv_map

    kernel = functools.partial(_flash_kernel, seq_len=seq_len, tq=tq, tk=tk,
                               group=group, compute_dtype=compute_dtype)

    return pl.pallas_call(
        kernel,
        out_shape=jax.ShapeDtypeStruct((num_heads, S_pad, D), compute_dtype),
        grid_spec=pltpu.PrefetchScalarGridSpec(
            num_scalar_prefetch=0,
            grid=grid,
            in_specs=[
                pl.BlockSpec((group, tq, D), q_map),                          # q group
                pl.BlockSpec((1, tk, D), kv_map_offset(num_heads)),           # k (per kv-head)
                pl.BlockSpec((1, tk, D), kv_map_offset(num_heads + num_kv_heads)),  # v
            ],
            out_specs=pl.BlockSpec((group, tq, D), q_map),
            scratch_shapes=[
                pltpu.VMEM((group, tq, 1), jnp.float32),   # running max
                pltpu.VMEM((group, tq, 1), jnp.float32),   # running denom
                pltpu.VMEM((group, tq, D), jnp.float32),   # output accumulator
            ],
        ),
        compiler_params=pltpu.CompilerParams(
            dimension_semantics=("parallel", "parallel", "arbitrary"),
        ),
    )(qkv_hm, qkv_hm, qkv_hm)


# ---------------------------------------------------------------------------
# 4) output projection reducing over the head axis (no transpose, no bias)
# ---------------------------------------------------------------------------
def _oproj_kernel(a_ref, w_ref, o_ref, acc_ref, *, head_block):
    k = pl.program_id(2)

    @pl.when(k == 0)
    def _():
        acc_ref[...] = jnp.zeros_like(acc_ref)

    for h in range(head_block):
        acc_ref[...] += jnp.dot(a_ref[h], w_ref[h],
                                preferred_element_type=jnp.float32)

    @pl.when(k == pl.num_programs(2) - 1)
    def _():
        o_ref[...] = acc_ref[...].astype(o_ref.dtype)


def _o_proj(attn_hm, w_o, out_dtype, *, tm, tn, head_block):
    nH, S_pad, D = attn_hm.shape
    _, _, N = w_o.shape
    assert nH % head_block == 0 and S_pad % tm == 0 and N % tn == 0
    grid = (S_pad // tm, N // tn, nH // head_block)
    kernel = functools.partial(_oproj_kernel, head_block=head_block)
    return pl.pallas_call(
        kernel,
        out_shape=jax.ShapeDtypeStruct((S_pad, N), out_dtype),
        grid_spec=pltpu.PrefetchScalarGridSpec(
            num_scalar_prefetch=0,
            grid=grid,
            in_specs=[
                pl.BlockSpec((head_block, tm, D), lambda i, j, k: (k, i, 0)),  # attention (head-major)
                pl.BlockSpec((head_block, D, tn), lambda i, j, k: (k, 0, j)),  # w_o (head-major)
            ],
            out_specs=pl.BlockSpec((tm, tn), lambda i, j, k: (i, j)),
            scratch_shapes=[pltpu.VMEM((tm, tn), jnp.float32)],
        ),
        compiler_params=pltpu.CompilerParams(
            dimension_semantics=("parallel", "parallel", "arbitrary"),
        ),
    )(attn_hm, w_o)


# ---------------------------------------------------------------------------
# module wrapper
# ---------------------------------------------------------------------------
def prepare_qwen2_attention_params(w_qkv, b_qkv, w_o, *, num_heads, num_kv_heads,
                                   compute_dtype=jnp.bfloat16):
    """One-time weight prep (outside the hot path):
       - transpose PyTorch [out, in] weights to right-multiply form,
       - fold 1/sqrt(head_dim) into the Q rows of w_qkv / b_qkv,
       - reshape w_o to (num_heads, head_dim, hidden) so o_proj consumes the
         head-major attention output without any transpose."""
    w_qkv = jnp.asarray(w_qkv, jnp.float32)
    b_qkv = jnp.asarray(b_qkv, jnp.float32)
    w_o = jnp.asarray(w_o, jnp.float32)

    hidden = w_qkv.shape[1]
    head_dim = hidden // num_heads
    q_size = num_heads * head_dim
    scale = float(head_dim) ** -0.5

    row_scale = jnp.concatenate([
        jnp.full((q_size,), scale, jnp.float32),
        jnp.ones((w_qkv.shape[0] - q_size,), jnp.float32)])
    w_qkv = w_qkv * row_scale[:, None]
    b_qkv = b_qkv * row_scale

    out_hidden = w_o.shape[0]
    return {
        "w_qkv": w_qkv.T.astype(compute_dtype),               # (hidden, q+2kv), scale folded
        "b_qkv": b_qkv.reshape(1, -1).astype(jnp.float32),    # (1, q+2kv),    scale folded
        "w_o": w_o.T.reshape(num_heads, head_dim, out_hidden).astype(compute_dtype),
    }


def qwen2_attention(hidden_states, positions, params, *,
                    num_heads, num_kv_heads, rope_theta=10000.0,
                    compute_dtype=jnp.bfloat16, token_tile=256):
    """Prefill self-attention path of Qwen2Attention.

    hidden_states: (num_tokens, hidden), positions: (num_tokens,).
    token_tile is the S-dim tile used by all kernels (raise to 512 for long prefill).
    """
    S, H = hidden_states.shape
    assert H % num_heads == 0 and num_heads % num_kv_heads == 0
    D = H // num_heads
    assert D % 128 == 0, "head_dim must be a multiple of 128 (Qwen2 uses 128)"
    q_size = num_heads * D
    kv_size = num_kv_heads * D
    n_qkv = q_size + 2 * kv_size

    S_pad = _round_up(S, token_tile)
    x = jnp.pad(hidden_states, ((0, S_pad - S), (0, 0))).astype(compute_dtype)
    pos = jnp.pad(positions, (0, S_pad - S))

    # neox RoPE tables over the full head_dim, sign folded into sin.
    inv_freq = 1.0 / (rope_theta ** (jnp.arange(0, D, 2, dtype=jnp.float32) / D))
    freqs = pos.astype(jnp.float32)[:, None] * inv_freq[None, :]        # (S_pad, D/2)
    cos_f = jnp.concatenate([jnp.cos(freqs), jnp.cos(freqs)], axis=-1)  # (S_pad, D)
    sin_f = jnp.concatenate([-jnp.sin(freqs), jnp.sin(freqs)], axis=-1)

    # 1) fused QKV projection (+bias); 1/sqrt(D) already folded into the Q weights.
    qkv = _qkv_linear(x, params["w_qkv"], params["b_qkv"], compute_dtype,
                      tm=token_tile,
                      tn=_pick_tile(n_qkv, 512),
                      tk=_pick_tile(H, 2048))

    # 2) RoPE on Q/K fused with the split + relayout to head-major (single pass).
    qkv_hm = _rope_split(qkv, cos_f, sin_f, num_heads=num_heads,
                         num_kv_heads=num_kv_heads, head_dim=D,
                         tokens_tile=token_tile, out_dtype=compute_dtype)

    # 3) causal flash attention, GQA group batched per kv-head.
    attn_hm = _flash_attention(qkv_hm, num_heads=num_heads,
                               num_kv_heads=num_kv_heads, head_dim=D,
                               seq_len=S, tq=token_tile, tk=token_tile,
                               compute_dtype=compute_dtype)

    # 4) output projection (no bias), reducing directly over heads.
    head_block = _largest_divisor_leq(num_heads, max(1, 1024 // D))
    out = _o_proj(attn_hm, params["w_o"], hidden_states.dtype,
                  tm=token_tile, tn=_pick_tile(H, 512), head_block=head_block)
    return out[:S]


# ---------------------------------------------------------------------------
# pure-JAX reference (mirrors the PyTorch forward)
# ---------------------------------------------------------------------------
def qwen2_attention_reference(hidden_states, positions, w_qkv, b_qkv, w_o,
                              *, num_heads, num_kv_heads, rope_theta=10000.0):
    S, H = hidden_states.shape
    D = H // num_heads
    q_size, kv_size = num_heads * D, num_kv_heads * D
    scale = float(D) ** -0.5

    qkv = hidden_states @ w_qkv.T + b_qkv
    q = qkv[:, :q_size].reshape(S, num_heads, D)
    k = qkv[:, q_size:q_size + kv_size].reshape(S, num_kv_heads, D)
    v = qkv[:, q_size + kv_size:].reshape(S, num_kv_heads, D)

    half = D // 2
    inv_freq = 1.0 / (rope_theta ** (jnp.arange(0, D, 2, dtype=jnp.float32) / D))
    freqs = positions.astype(jnp.float32)[:, None] * inv_freq[None, :]
    cos, sin = jnp.cos(freqs)[:, None, :], jnp.sin(freqs)[:, None, :]

    def rope(x):
        x1, x2 = x[..., :half], x[..., half:]
        return jnp.concatenate([x1 * cos - x2 * sin, x2 * cos + x1 * sin], axis=-1)

    q, k = rope(q), rope(k)

    group = num_heads // num_kv_heads
    k = jnp.repeat(k, group, axis=1)
    v = jnp.repeat(v, group, axis=1)

    s = jnp.einsum("qhd,khd->hqk", q, k) * scale
    causal = jnp.tril(jnp.ones((S, S), dtype=bool))
    s = jnp.where(causal[None], s, -jnp.inf)
    p = jax.nn.softmax(s, axis=-1)
    o = jnp.einsum("hqk,khd->qhd", p, v).reshape(S, q_size)
    return o @ w_o.T


if __name__ == "__main__":
    hidden_size = 256
    num_heads = 2
    num_kv_heads = 1          # GQA: 2 query heads share 1 kv head
    seq_len = 8               # num_tokens (single flattened prefill sequence)
    head_dim = hidden_size // num_heads
    q_size = num_heads * head_dim
    kv_size = num_kv_heads * head_dim

    key = jax.random.PRNGKey(0)
    kx, kw, kb, ko = jax.random.split(key, 4)

    x = jax.random.normal(kx, (seq_len, hidden_size), dtype=jnp.float32)
    positions = jnp.arange(seq_len, dtype=jnp.int32)

    # PyTorch nn.Linear layout: [out_features, in_features]
    w_qkv = jax.random.normal(kw, (q_size + 2 * kv_size, hidden_size), jnp.float32) * 0.02
    b_qkv = jax.random.normal(kb, (q_size + 2 * kv_size,), jnp.float32) * 0.02
    w_o = jax.random.normal(ko, (hidden_size, q_size), jnp.float32) * 0.02

    params = prepare_qwen2_attention_params(
        w_qkv, b_qkv, w_o, num_heads=num_heads, num_kv_heads=num_kv_heads)

    out = qwen2_attention(x, positions, params,
                          num_heads=num_heads, num_kv_heads=num_kv_heads)
    out = jax.block_until_ready(out)

    ref = qwen2_attention_reference(x, positions, w_qkv, b_qkv, w_o,
                                    num_heads=num_heads, num_kv_heads=num_kv_heads)

    assert out.shape == (seq_len, hidden_size)
    err = jnp.max(jnp.abs(out - ref))
    assert jnp.allclose(out, ref, atol=2e-2, rtol=2e-2), f"mismatch vs reference: max abs err = {err}"

    print("KERNEL_OK")
</pallas_src>

<mosaic_0001>
module attributes {stable_mosaic.version = 11 : i64} {
  func.func @_qkv_linear_kernel(%arg0: i32, %arg1: i32, %arg2: i32, %arg3: memref<256x256xbf16, #tpu.memory_space<vmem>>, %arg4: memref<256x512xbf16, #tpu.memory_space<vmem>>, %arg5: memref<1x512xf32, #tpu.memory_space<vmem>>, %arg6: memref<256x512xbf16, #tpu.memory_space<vmem>>, %arg7: memref<256x512xf32, #tpu.memory_space<vmem>>) attributes {dimension_semantics = [#tpu.dimension_semantics<parallel>, #tpu.dimension_semantics<parallel>, #tpu.dimension_semantics<arbitrary>], iteration_bounds = array<i64: 1, 1, 1>, scalar_prefetch = 0 : i64, scratch_operands = 1 : i64, tpu.core_type = #tpu.core_type<tc>, window_params = [{transform_indices = @transform_0, window_bounds = array<i64: 256, 256>}, {transform_indices = @transform_1, window_bounds = array<i64: 256, 512>}, {transform_indices = @transform_2, window_bounds = array<i64: 1, 512>}, {transform_indices = @transform_3, window_bounds = array<i64: 256, 512>}]} {
    %c0_i32 = arith.constant 0 : i32
    %0 = arith.cmpi eq, %arg2, %c0_i32 : i32
    %1 = arith.extui %0 : i1 to i32
    %c0_i32_0 = arith.constant 0 : i32
    %2 = arith.cmpi ne, %1, %c0_i32_0 : i32
    scf.if %2 {
      %cst_10 = arith.constant 0.000000e+00 : f32
      %12 = vector.broadcast %cst_10 : f32 to vector<256x512xf32>
      %c0_11 = arith.constant 0 : index
      %c0_12 = arith.constant 0 : index
      %13 = vector.load %arg7[%c0_11, %c0_12] : memref<256x512xf32, #tpu.memory_space<vmem>>, vector<256x512xf32>
      tpu.vector_store %arg7[%c0_11, %c0_12], %12 {strides = array<i32>} : memref<256x512xf32, #tpu.memory_space<vmem>>, vector<256x512xf32>,
    } else {
    }
    %c0 = arith.constant 0 : index
    %c0_1 = arith.constant 0 : index
    %3 = vector.load %arg7[%c0, %c0_1] : memref<256x512xf32, #tpu.memory_space<vmem>>, vector<256x512xf32>
    %c0_2 = arith.constant 0 : index
    %c0_3 = arith.constant 0 : index
    %4 = vector.load %arg3[%c0_2, %c0_3] : memref<256x256xbf16, #tpu.memory_space<vmem>>, vector<256x256xbf16>
    %c0_4 = arith.constant 0 : index
    %c0_5 = arith.constant 0 : index
    %5 = vector.load %arg4[%c0_4, %c0_5] : memref<256x512xbf16, #tpu.memory_space<vmem>>, vector<256x512xbf16>
    %cst = arith.constant dense<0.000000e+00> : vector<256x512xf32>
    %6 = tpu.matmul %4, %5, %cst {dimension_numbers = #tpu.dot_dimension_numbers<[1], [0], [0], [1], [0, 0, 1, 1], [], []>} : vector<256x256xbf16>, vector<256x512xbf16>, vector<256x512xf32> -> vector<256x512xf32>
    %7 = arith.addf %3, %6 : vector<256x512xf32>
    %c0_6 = arith.constant 0 : index
    %c0_7 = arith.constant 0 : index
    %8 = vector.load %arg7[%c0_6, %c0_7] : memref<256x512xf32, #tpu.memory_space<vmem>>, vector<256x512xf32>
    tpu.vector_store %arg7[%c0_6, %c0_7], %7 {strides = array<i32>} : memref<256x512xf32, #tpu.memory_space<vmem>>, vector<256x512xf32>,
    %c0_i32_8 = arith.constant 0 : i32
    %9 = arith.cmpi eq, %arg2, %c0_i32_8 : i32
    %10 = arith.extui %9 : i1 to i32
    %c0_i32_9 = arith.constant 0 : i32
    %11 = arith.cmpi ne, %10, %c0_i32_9 : i32
    scf.if %11 {
      %c0_10 = arith.constant 0 : index
      %c0_11 = arith.constant 0 : index
      %12 = vector.load %arg7[%c0_10, %c0_11] : memref<256x512xf32, #tpu.memory_space<vmem>>, vector<256x512xf32>
      %c0_12 = arith.constant 0 : index
      %c0_13 = arith.constant 0 : index
      %13 = vector.load %arg5[%c0_12, %c0_13] : memref<1x512xf32, #tpu.memory_space<vmem>>, vector<1x512xf32>
      %14 = vector.broadcast %13 : vector<1x512xf32> to vector<256x512xf32>
      %15 = arith.addf %12, %14 : vector<256x512xf32>
      %16 = arith.truncf %15 : vector<256x512xf32> to vector<256x512xbf16>
      %c0_14 = arith.constant 0 : index
      %c0_15 = arith.constant 0 : index
      %17 = vector.load %arg6[%c0_14, %c0_15] : memref<256x512xbf16, #tpu.memory_space<vmem>>, vector<256x512xbf16>
      tpu.vector_store %arg6[%c0_14, %c0_15], %16 {strides = array<i32>} : memref<256x512xbf16, #tpu.memory_space<vmem>>, vector<256x512xbf16>,
    } else {
    }
    return
  }
  func.func @transform_0(%arg0: i32, %arg1: i32, %arg2: i32) -> (i32, i32) {
    %c0_i32 = arith.constant 0 : i32
    return %arg0, %arg2 : i32, i32
  }
  func.func @transform_1(%arg0: i32, %arg1: i32, %arg2: i32) -> (i32, i32) {
    %c0_i32 = arith.constant 0 : i32
    return %arg2, %arg1 : i32, i32
  }
  func.func @transform_2(%arg0: i32, %arg1: i32, %arg2: i32) -> (i32, i32) {
    %c0_i32 = arith.constant 0 : i32
    %c0_i32_0 = arith.constant 0 : i32
    return %c0_i32, %arg1 : i32, i32
  }
  func.func @transform_3(%arg0: i32, %arg1: i32, %arg2: i32) -> (i32, i32) {
    %c0_i32 = arith.constant 0 : i32
    return %arg0, %arg1 : i32, i32
  }
}

</mosaic_0001>

<llo_original>
// kernel: tpu_custom_call.1
$region0: #{tpu_custom_call.1}
  #allocation0 [shape = 'u32[]', space=smem, size = 0x4, offset = 0x4, fixed_abs, tag = 'smem constant byte address 0x4 - core index']
  #allocation1 [shape = 'u32[144,128]{1,0:T(1,128)}', space=vmem, size = 0x12000, scoped, tag = 'internal scratch']
  #allocation2 [shape = 'f32[256,512]{1,0:T(8,128)}', space=vmem, size = 0x80000, scoped, tag = 'scratch operand']
  %s0 = inlined_call_operand.hbm [shape: bf16[256,256], index: 0, kind: input, shape index: {}]
  %s1 = inlined_call_operand.hbm [shape: bf16[256,512], index: 1, kind: input, shape index: {}]
  %s2 = inlined_call_operand.hbm [shape: f32[1,512], index: 2, kind: input, shape index: {}]
  %s3 = inlined_call_operand.hbm [shape: bf16[256,512], index: 3, kind: output, shape index: {}]
  %s4 = sld [smem:[#allocation0]]
  $region42: #{tpu_custom_call.1} parent=0
    _
  %s6 = ssub.s32 1, %s4
  %s7 = scalar_select 0, %s6, %s4
  $region1: #{tpu_custom_call.1} parent=0
    #allocation3 [shape = 'u8[131072]{0}', space=vmem, size = 0x20000, scoped, tag = 'input window, operand 0, single buffered']
    #allocation4 [shape = 's32[1]{0}', space=sflag, size = 0x4, scoped, tag = 'scoped memory for tpu_custom_call.1']
    #allocation5 [shape = 's32[1]{0}', space=sflag, size = 0x4, scoped, tag = 'scoped memory for tpu_custom_call.1']
    #allocation6 [shape = 'u8[262144]{0}', space=vmem, size = 0x40000, scoped, tag = 'input window, operand 1, single buffered']
    #allocation7 [shape = 's32[1]{0}', space=sflag, size = 0x4, scoped, tag = 'scoped memory for tpu_custom_call.1']
    #allocation8 [shape = 'u8[2048]{0}', space=vmem, size = 0x800, scoped, tag = 'input window, operand 2, single buffered']
    #allocation9 [shape = 'u8[262144]{0}', space=vmem, size = 0x40000, scoped, tag = 'output window, operand 0, single buffered']
    %8 = vsyncpa [#allocation4], 0
    %9 = vsyncpa [#allocation7], 0
    %10 = vsyncpa [#allocation5], 0
    // Predicated region
    $region2: #{tpu_custom_call.1} parent=1 // pred_check
      _
    $region3: #{tpu_custom_call.1} parent=1 // pred_check_branch
      %12 = sbr.rel (0) target = $region5
    $region4: #{tpu_custom_call.1} parent=1 // pred_region
      %s14 = ssub.s32 4096, 4096
      %15 = vsyncadd [#allocation4], %s14
      %s16 = sshll.u32 [#allocation3], 4
      %s17 = int_to_ptr.vmem [resolvable:$true] %s16
      %22 = dma.hbm_to_vmem [thread:$0]  %s0, 4096, %s17, [#allocation4], 128, 128, 8
    $region5: #{tpu_custom_call.1} parent=1 // pred_fallthru
      _
    // Predicated region
    $region6: #{tpu_custom_call.1} parent=1 // pred_check
      _
    $region7: #{tpu_custom_call.1} parent=1 // pred_check_branch
      %24 = sbr.rel (0) target = $region9
    $region8: #{tpu_custom_call.1} parent=1 // pred_region
      %s26 = ssub.s32 8192, 8192
      %27 = vsyncadd [#allocation7], %s26
      %s28 = sshll.u32 [#allocation6], 4
      %s29 = int_to_ptr.vmem [resolvable:$true] %s28
      %34 = dma.hbm_to_vmem [thread:$0]  %s1, 8192, %s29, [#allocation7], 256, 256, 16
    $region9: #{tpu_custom_call.1} parent=1 // pred_fallthru
      _
    // Predicated region
    $region10: #{tpu_custom_call.1} parent=1 // pred_check
      _
    $region11: #{tpu_custom_call.1} parent=1 // pred_check_branch
      %36 = sbr.rel (0) target = $region13
    $region12: #{tpu_custom_call.1} parent=1 // pred_region
      %s38 = ssub.s32 64, 64
      %39 = vsyncadd [#allocation7], %s38
      %s41 = sshll.u32 [#allocation8], 4
      %s42 = int_to_ptr.vmem [resolvable:$true] %s41
      %44 = dma.hbm_to_vmem [thread:$0]  %s2, 64, %s42, [#allocation7]
    $region13: #{tpu_custom_call.1} parent=1 // pred_fallthru
      _
    // Predicated region
    $region14: #{tpu_custom_call.1} parent=1 // pred_check
      _
    $region15: #{tpu_custom_call.1} parent=1 // pred_check_branch
      %46 = sbr.rel (0) target = $region17
    $region16: #{tpu_custom_call.1} parent=1 // pred_region
      %47 = dma.done [#allocation4], 4096
    $region17: #{tpu_custom_call.1} parent=1 // pred_fallthru
      _
    // Predicated region
    $region18: #{tpu_custom_call.1} parent=1 // pred_check
      _
    $region19: #{tpu_custom_call.1} parent=1 // pred_check_branch
      %49 = sbr.rel (0) target = $region21
    $region20: #{tpu_custom_call.1} parent=1 // pred_region
      %50 = dma.done [#allocation7], 8192
    $region21: #{tpu_custom_call.1} parent=1 // pred_fallthru
      _
    // Predicated region
    $region22: #{tpu_custom_call.1} parent=1 // pred_check
      _
    $region23: #{tpu_custom_call.1} parent=1 // pred_check_branch
      %52 = sbr.rel (0) target = $region25
    $region24: #{tpu_custom_call.1} parent=1 // pred_region
      %53 = dma.done [#allocation7], 64
    $region25: #{tpu_custom_call.1} parent=1 // pred_fallthru
      _
    %p54 = scmp.eq.s32.totalorder 0, 0
    // Predicated region
    $region26: #{tpu_custom_call.1} parent=1 // pred_check
      %p55 = pneg %p54
    $region27: #{tpu_custom_call.1} parent=1 // pred_check_branch
      %57 = sbr.rel (%p55) target = $region29
    $region28: #{tpu_custom_call.1} parent=1 // pred_region
      %58 = vst [vmem:[#allocation2] sm:$0xff] 0.0
      %59 = vst [vmem:[#allocation2 + $0x8] sm:$0xff] 0.0
      %60 = vst [vmem:[#allocation2 + $0x10] sm:$0xff] 0.0
      %61 = vst [vmem:[#allocation2 + $0x18] sm:$0xff] 0.0
      %62 = vst [vmem:[#allocation2 + $0x20] sm:$0xff] 0.0
      %63 = vst [vmem:[#allocation2 + $0x28] sm:$0xff] 0.0
      %64 = vst [vmem:[#allocation2 + $0x30] sm:$0xff] 0.0
      %65 = vst [vmem:[#allocation2 + $0x38] sm:$0xff] 0.0
      %66 = vst [vmem:[#allocation2 + $0x40] sm:$0xff] 0.0
      %67 = vst [vmem:[#allocation2 + $0x48] sm:$0xff] 0.0
      %68 = vst [vmem:[#allocation2 + $0x50] sm:$0xff] 0.0
      %69 = vst [vmem:[#allocation2 + $0x58] sm:$0xff] 0.0
      %70 = vst [vmem:[#allocation2 + $0x60] sm:$0xff] 0.0
      %71 = vst [vmem:[#allocation2 + $0x68] sm:$0xff] 0.0
      %72 = vst [vmem:[#allocation2 + $0x70] sm:$0xff] 0.0
      %73 = vst [vmem:[#allocation2 + $0x78] sm:$0xff] 0.0
      %74 = vst [vmem:[#allocation2 + $0x80] sm:$0xff] 0.0
      %75 = vst [vmem:[#allocation2 + $0x88] sm:$0xff] 0.0
      %76 = vst [vmem:[#allocation2 + $0x90] sm:$0xff] 0.0
      %77 = vst [vmem:[#allocation2 + $0x98] sm:$0xff] 0.0
      %78 = vst [vmem:[#allocation2 + $0xa0] sm:$0xff] 0.0
      %79 = vst [vmem:[#allocation2 + $0xa8] sm:$0xff] 0.0
      %80 = vst [vmem:[#allocation2 + $0xb0] sm:$0xff] 0.0
      %81 = vst [vmem:[#allocation2 + $0xb8] sm:$0xff] 0.0
      %82 = vst [vmem:[#allocation2 + $0xc0] sm:$0xff] 0.0
      %83 = vst [vmem:[#allocation2 + $0xc8] sm:$0xff] 0.0
      %84 = vst [vmem:[#allocation2 + $0xd0] sm:$0xff] 0.0
      %85 = vst [vmem:[#allocation2 + $0xd8] sm:$0xff] 0.0
      %86 = vst [vmem:[#allocation2 + $0xe0] sm:$0xff] 0.0
      %87 = vst [vmem:[#allocation2 + $0xe8] sm:$0xff] 0.0
      %88 = vst [vmem:[#allocation2 + $0xf0] sm:$0xff] 0.0
      %89 = vst [vmem:[#allocation2 + $0xf8] sm:$0xff] 0.0
      %90 = vst [vmem:[#allocation2 + $0x100] sm:$0xff] 0.0
      %91 = vst [vmem:[#allocation2 + $0x108] sm:$0xff] 0.0
      %92 = vst [vmem:[#allocation2 + $0x110] sm:$0xff] 0.0
      %93 = vst [vmem:[#allocation2 + $0x118] sm:$0xff] 0.0
      %94 = vst [vmem:[#allocation2 + $0x120] sm:$0xff] 0.0
      %95 = vst [vmem:[#allocation2 + $0x128] sm:$0xff] 0.0
      %96 = vst [vmem:[#allocation2 + $0x130] sm:$0xff] 0.0
      %97 = vst [vmem:[#allocation2 + $0x138] sm:$0xff] 0.0
      %98 = vst [vmem:[#allocation2 + $0x140] sm:$0xff] 0.0
      %99 = vst [vmem:[#allocation2 + $0x148] sm:$0xff] 0.0
      %100 = vst [vmem:[#allocation2 + $0x150] sm:$0xff] 0.0
      %101 = vst [vmem:[#allocation2 + $0x158] sm:$0xff] 0.0
      %102 = vst [vmem:[#allocation2 + $0x160] sm:$0xff] 0.0
      %103 = vst [vmem:[#allocation2 + $0x168] sm:$0xff] 0.0
      %104 = vst [vmem:[#allocation2 + $0x170] sm:$0xff] 0.0
      %105 = vst [vmem:[#allocation2 + $0x178] sm:$0xff] 0.0
      %106 = vst [vmem:[#allocation2 + $0x180] sm:$0xff] 0.0
      %107 = vst [vmem:[#allocation2 + $0x188] sm:$0xff] 0.0
      %108 = vst [vmem:[#allocation2 + $0x190] sm:$0xff] 0.0
      %109 = vst [vmem:[#allocation2 + $0x198] sm:$0xff] 0.0
      %110 = vst [vmem:[#allocation2 + $0x1a0] sm:$0xff] 0.0
      %111 = vst [vmem:[#allocation2 + $0x1a8] sm:$0xff] 0.0
      %112 = vst [vmem:[#allocation2 + $0x1b0] sm:$0xff] 0.0
      %113 = vst [vmem:[#allocation2 + $0x1b8] sm:$0xff] 0.0
      %114 = vst [vmem:[#allocation2 + $0x1c0] sm:$0xff] 0.0
      %115 = vst [vmem:[#allocation2 + $0x1c8] sm:$0xff] 0.0
      %116 = vst [vmem:[#allocation2 + $0x1d0] sm:$0xff] 0.0
      %117 = vst [vmem:[#allocation2 + $0x1d8] sm:$0xff] 0.0
      %118 = vst [vmem:[#allocation2 + $0x1e0] sm:$0xff] 0.0
      %119 = vst [vmem:[#allocation2 + $0x1e8] sm:$0xff] 0.0
      %120 = vst [vmem:[#allocation2 + $0x1f0] sm:$0xff] 0.0
      %121 = vst [vmem:[#allocation2 + $0x1f8] sm:$0xff] 0.0
      %122 = vst [vmem:[#allocation2 + $0x200] sm:$0xff] 0.0
      %123 = vst [vmem:[#allocation2 + $0x208] sm:$0xff] 0.0
      %124 = vst [vmem:[#allocation2 + $0x210] sm:$0xff] 0.0
      %125 = vst [vmem:[#allocation2 + $0x218] sm:$0xff] 0.0
      %126 = vst [vmem:[#allocation2 + $0x220] sm:$0xff] 0.0
      %127 = vst [vmem:[#allocation2 + $0x228] sm:$0xff] 0.0
      %128 = vst [vmem:[#allocation2 + $0x230] sm:$0xff] 0.0
      %129 = vst [vmem:[#allocation2 + $0x238] sm:$0xff] 0.0
      %130 = vst [vmem:[#allocation2 + $0x240] sm:$0xff] 0.0
      %131 = vst [vmem:[#allocation2 + $0x248] sm:$0xff] 0.0
      %132 = vst [vmem:[#allocation2 + $0x250] sm:$0xff] 0.0
      %133 = vst [vmem:[#allocation2 + $0x258] sm:$0xff] 0.0
      %134 = vst [vmem:[#allocation2 + $0x260] sm:$0xff] 0.0
      %135 = vst [vmem:[#allocation2 + $0x268] sm:$0xff] 0.0
      %136 = vst [vmem:[#allocation2 + $0x270] sm:$0xff] 0.0
      %137 = vst [vmem:[#allocation2 + $0x278] sm:$0xff] 0.0
      %138 = vst [vmem:[#allocation2 + $0x280] sm:$0xff] 0.0
      %139 = vst [vmem:[#allocation2 + $0x288] sm:$0xff] 0.0
      %140 = vst [vmem:[#allocation2 + $0x290] sm:$0xff] 0.0
      %141 = vst [vmem:[#allocation2 + $0x298] sm:$0xff] 0.0
      %142 = vst [vmem:[#allocation2 + $0x2a0] sm:$0xff] 0.0
      %143 = vst [vmem:[#allocation2 + $0x2a8] sm:$0xff] 0.0
      %144 = vst [vmem:[#allocation2 + $0x2b0] sm:$0xff] 0.0
      %145 = vst [vmem:[#allocation2 + $0x2b8] sm:$0xff] 0.0
      %146 = vst [vmem:[#allocation2 + $0x2c0] sm:$0xff] 0.0
      %147 = vst [vmem:[#allocation2 + $0x2c8] sm:$0xff] 0.0
      %148 = vst [vmem:[#allocation2 + $0x2d0] sm:$0xff] 0.0
      %149 = vst [vmem:[#allocation2 + $0x2d8] sm:$0xff] 0.0
      %150 = vst [vmem:[#allocation2 + $0x2e0] sm:$0xff] 0.0
      %151 = vst [vmem:[#allocation2 + $0x2e8] sm:$0xff] 0.0
      %152 = vst [vmem:[#allocation2 + $0x2f0] sm:$0xff] 0.0
      %153 = vst [vmem:[#allocation2 + $0x2f8] sm:$0xff] 0.0
      %154 = vst [vmem:[#allocation2 + $0x300] sm:$0xff] 0.0
      %155 = vst [vmem:[#allocation2 + $0x308] sm:$0xff] 0.0
      %156 = vst [vmem:[#allocation2 + $0x310] sm:$0xff] 0.0
      %157 = vst [vmem:[#allocation2 + $0x318] sm:$0xff] 0.0
      %158 = vst [vmem:[#allocation2 + $0x320] sm:$0xff] 0.0
      %159 = vst [vmem:[#allocation2 + $0x328] sm:$0xff] 0.0
      %160 = vst [vmem:[#allocation2 + $0x330] sm:$0xff] 0.0
      %161 = vst [vmem:[#allocation2 + $0x338] sm:$0xff] 0.0
      %162 = vst [vmem:[#allocation2 + $0x340] sm:$0xff] 0.0
      %163 = vst [vmem:[#allocation2 + $0x348] sm:$0xff] 0.0
      %164 = vst [vmem:[#allocation2 + $0x350] sm:$0xff] 0.0
      %165 = vst [vmem:[#allocation2 + $0x358] sm:$0xff] 0.0
      %166 = vst [vmem:[#allocation2 + $0x360] sm:$0xff] 0.0
      %167 = vst [vmem:[#allocation2 + $0x368] sm:$0xff] 0.0
      %168 = vst [vmem:[#allocation2 + $0x370] sm:$0xff] 0.0
      %169 = vst [vmem:[#allocation2 + $0x378] sm:$0xff] 0.0
      %170 = vst [vmem:[#allocation2 + $0x380] sm:$0xff] 0.0
      %171 = vst [vmem:[#allocation2 + $0x388] sm:$0xff] 0.0
      %172 = vst [vmem:[#allocation2 + $0x390] sm:$0xff] 0.0
      %173 = vst [vmem:[#allocation2 + $0x398] sm:$0xff] 0.0
      %174 = vst [vmem:[#allocation2 + $0x3a0] sm:$0xff] 0.0
      %175 = vst [vmem:[#allocation2 + $0x3a8] sm:$0xff] 0.0
      %176 = vst [vmem:[#allocation2 + $0x3b0] sm:$0xff] 0.0
      %177 = vst [vmem:[#allocation2 + $0x3b8] sm:$0xff] 0.0
      %178 = vst [vmem:[#allocation2 + $0x3c0] sm:$0xff] 0.0
      %179 = vst [vmem:[#allocation2 + $0x3c8] sm:$0xff] 0.0
      %180 = vst [vmem:[#allocation2 + $0x3d0] sm:$0xff] 0.0
      %181 = vst [vmem:[#allocation2 + $0x3d8] sm:$0xff] 0.0
      %182 = vst [vmem:[#allocation2 + $0x3e0] sm:$0xff] 0.0
      %183 = vst [vmem:[#allocation2 + $0x3e8] sm:$0xff] 0.0
      %184 = vst [vmem:[#allocation2 + $0x3f0] sm:$0xff] 0.0
      %185 = vst [vmem:[#allocation2 + $0x3f8] sm:$0xff] 0.0
    $region29: #{tpu_custom_call.1} parent=1 // pred_fallthru
      _
    %v186 = vld [vmem:[#allocation2] sm:$0xff]
    %v187 = vld [vmem:[#allocation2 + $0x8] sm:$0xff]
    %v188 = vld [vmem:[#allocation2 + $0x10] sm:$0xff]
    %v189 = vld [vmem:[#allocation2 + $0x18] sm:$0xff]
    %v190 = vld [vmem:[#allocation2 + $0x20] sm:$0xff]
    %v191 = vld [vmem:[#allocation2 + $0x28] sm:$0xff]
    %v192 = vld [vmem:[#allocation2 + $0x30] sm:$0xff]
    %v193 = vld [vmem:[#allocation2 + $0x38] sm:$0xff]
    %v194 = vld [vmem:[#allocation2 + $0x40] sm:$0xff]
    %v195 = vld [vmem:[#allocation2 + $0x48] sm:$0xff]
    %v196 = vld [vmem:[#allocation2 + $0x50] sm:$0xff]
    %v197 = vld [vmem:[#allocation2 + $0x58] sm:$0xff]
    %v198 = vld [vmem:[#allocation2 + $0x60] sm:$0xff]
    %v199 = vld [vmem:[#allocation2 + $0x68] sm:$0xff]
    %v200 = vld [vmem:[#allocation2 + $0x70] sm:$0xff]
    %v201 = vld [vmem:[#allocation2 + $0x78] sm:$0xff]
    %v202 = vld [vmem:[#allocation2 + $0x80] sm:$0xff]
    %v203 = vld [vmem:[#allocation2 + $0x88] sm:$0xff]
    %v204 = vld [vmem:[#allocation2 + $0x90] sm:$0xff]
    %v205 = vld [vmem:[#allocation2 + $0x98] sm:$0xff]
    %v206 = vld [vmem:[#allocation2 + $0xa0] sm:$0xff]
    %v207 = vld [vmem:[#allocation2 + $0xa8] sm:$0xff]
    %v208 = vld [vmem:[#allocation2 + $0xb0] sm:$0xff]
    %v209 = vld [vmem:[#allocation2 + $0xb8] sm:$0xff]
    %v210 = vld [vmem:[#allocation2 + $0xc0] sm:$0xff]
    %v211 = vld [vmem:[#allocation2 + $0xc8] sm:$0xff]
    %v212 = vld [vmem:[#allocation2 + $0xd0] sm:$0xff]
    %v213 = vld [vmem:[#allocation2 + $0xd8] sm:$0xff]
    %v214 = vld [vmem:[#allocation2 + $0xe0] sm:$0xff]
    %v215 = vld [vmem:[#allocation2 + $0xe8] sm:$0xff]
    %v216 = vld [vmem:[#allocation2 + $0xf0] sm:$0xff]
    %v217 = vld [vmem:[#allocation2 + $0xf8] sm:$0xff]
    %v218 = vld [vmem:[#allocation2 + $0x100] sm:$0xff]
    %v219 = vld [vmem:[#allocation2 + $0x108] sm:$0xff]
    %v220 = vld [vmem:[#allocation2 + $0x110] sm:$0xff]
    %v221 = vld [vmem:[#allocation2 + $0x118] sm:$0xff]
    %v222 = vld [vmem:[#allocation2 + $0x120] sm:$0xff]
    %v223 = vld [vmem:[#allocation2 + $0x128] sm:$0xff]
    %v224 = vld [vmem:[#allocation2 + $0x130] sm:$0xff]
    %v225 = vld [vmem:[#allocation2 + $0x138] sm:$0xff]
    %v226 = vld [vmem:[#allocation2 + $0x140] sm:$0xff]
    %v227 = vld [vmem:[#allocation2 + $0x148] sm:$0xff]
    %v228 = vld [vmem:[#allocation2 + $0x150] sm:$0xff]
    %v229 = vld [vmem:[#allocation2 + $0x158] sm:$0xff]
    %v230 = vld [vmem:[#allocation2 + $0x160] sm:$0xff]
    %v231 = vld [vmem:[#allocation2 + $0x168] sm:$0xff]
    %v232 = vld [vmem:[#allocation2 + $0x170] sm:$0xff]
    %v233 = vld [vmem:[#allocation2 + $0x178] sm:$0xff]
    %v234 = vld [vmem:[#allocation2 + $0x180] sm:$0xff]
    %v235 = vld [vmem:[#allocation2 + $0x188] sm:$0xff]
    %v236 = vld [vmem:[#allocation2 + $0x190] sm:$0xff]
    %v237 = vld [vmem:[#allocation2 + $0x198] sm:$0xff]
    %v238 = vld [vmem:[#allocation2 + $0x1a0] sm:$0xff]
    %v239 = vld [vmem:[#allocation2 + $0x1a8] sm:$0xff]
    %v240 = vld [vmem:[#allocation2 + $0x1b0] sm:$0xff]
    %v241 = vld [vmem:[#allocation2 + $0x1b8] sm:$0xff]
    %v242 = vld [vmem:[#allocation2 + $0x1c0] sm:$0xff]
    %v243 = vld [vmem:[#allocation2 + $0x1c8] sm:$0xff]
    %v244 = vld [vmem:[#allocation2 + $0x1d0] sm:$0xff]
    %v245 = vld [vmem:[#allocation2 + $0x1d8] sm:$0xff]
    %v246 = vld [vmem:[#allocation2 + $0x1e0] sm:$0xff]
    %v247 = vld [vmem:[#allocation2 + $0x1e8] sm:$0xff]
    %v248 = vld [vmem:[#allocation2 + $0x1f0] sm:$0xff]
    %v249 = vld [vmem:[#allocation2 + $0x1f8] sm:$0xff]
    %v250 = vld [vmem:[#allocation2 + $0x200] sm:$0xff]
    %v251 = vld [vmem:[#allocation2 + $0x208] sm:$0xff]
    %v252 = vld [vmem:[#allocation2 + $0x210] sm:$0xff]
    %v253 = vld [vmem:[#allocation2 + $0x218] sm:$0xff]
    %v254 = vld [vmem:[#allocation2 + $0x220] sm:$0xff]
    %v255 = vld [vmem:[#allocation2 + $0x228] sm:$0xff]
    %v256 = vld [vmem:[#allocation2 + $0x230] sm:$0xff]
    %v257 = vld [vmem:[#allocation2 + $0x238] sm:$0xff]
    %v258 = vld [vmem:[#allocation2 + $0x240] sm:$0xff]
    %v259 = vld [vmem:[#allocation2 + $0x248] sm:$0xff]
    %v260 = vld [vmem:[#allocation2 + $0x250] sm:$0xff]
    %v261 = vld [vmem:[#allocation2 + $0x258] sm:$0xff]
    %v262 = vld [vmem:[#allocation2 + $0x260] sm:$0xff]
    %v263 = vld [vmem:[#allocation2 + $0x268] sm:$0xff]
    %v264 = vld [vmem:[#allocation2 + $0x270] sm:$0xff]
    %v265 = vld [vmem:[#allocation2 + $0x278] sm:$0xff]
    %v266 = vld [vmem:[#allocation2 + $0x280] sm:$0xff]
    %v267 = vld [vmem:[#allocation2 + $0x288] sm:$0xff]
    %v268 = vld [vmem:[#allocation2 + $0x290] sm:$0xff]
    %v269 = vld [vmem:[#allocation2 + $0x298] sm:$0xff]
    %v270 = vld [vmem:[#allocation2 + $0x2a0] sm:$0xff]
    %v271 = vld [vmem:[#allocation2 + $0x2a8] sm:$0xff]
    %v272 = vld [vmem:[#allocation2 + $0x2b0] sm:$0xff]
    %v273 = vld [vmem:[#allocation2 + $0x2b8] sm:$0xff]
    %v274 = vld [vmem:[#allocation2 + $0x2c0] sm:$0xff]
    %v275 = vld [vmem:[#allocation2 + $0x2c8] sm:$0xff]
    %v276 = vld [vmem:[#allocation2 + $0x2d0] sm:$0xff]
    %v277 = vld [vmem:[#allocation2 + $0x2d8] sm:$0xff]
    %v278 = vld [vmem:[#allocation2 + $0x2e0] sm:$0xff]
    %v279 = vld [vmem:[#allocation2 + $0x2e8] sm:$0xff]
    %v280 = vld [vmem:[#allocation2 + $0x2f0] sm:$0xff]
    %v281 = vld [vmem:[#allocation2 + $0x2f8] sm:$0xff]
    %v282 = vld [vmem:[#allocation2 + $0x300] sm:$0xff]
    %v283 = vld [vmem:[#allocation2 + $0x308] sm:$0xff]
    %v284 = vld [vmem:[#allocation2 + $0x310] sm:$0xff]
    %v285 = vld [vmem:[#allocation2 + $0x318] sm:$0xff]
    %v286 = vld [vmem:[#allocation2 + $0x320] sm:$0xff]
    %v287 = vld [vmem:[#allocation2 + $0x328] sm:$0xff]
    %v288 = vld [vmem:[#allocation2 + $0x330] sm:$0xff]
    %v289 = vld [vmem:[#allocation2 + $0x338] sm:$0xff]
    %v290 = vld [vmem:[#allocation2 + $0x340] sm:$0xff]
    %v291 = vld [vmem:[#allocation2 + $0x348] sm:$0xff]
    %v292 = vld [vmem:[#allocation2 + $0x350] sm:$0xff]
    %v293 = vld [vmem:[#allocation2 + $0x358] sm:$0xff]
    %v294 = vld [vmem:[#allocation2 + $0x360] sm:$0xff]
    %v295 = vld [vmem:[#allocation2 + $0x368] sm:$0xff]
    %v296 = vld [vmem:[#allocation2 + $0x370] sm:$0xff]
    %v297 = vld [vmem:[#allocation2 + $0x378] sm:$0xff]
    %v298 = vld [vmem:[#allocation2 + $0x380] sm:$0xff]
    %v299 = vld [vmem:[#allocation2 + $0x388] sm:$0xff]
    %v300 = vld [vmem:[#allocation2 + $0x390] sm:$0xff]
    %v301 = vld [vmem:[#allocation2 + $0x398] sm:$0xff]
    %v302 = vld [vmem:[#allocation2 + $0x3a0] sm:$0xff]
    %v303 = vld [vmem:[#allocation2 + $0x3a8] sm:$0xff]
    %v304 = vld [vmem:[#allocation2 + $0x3b0] sm:$0xff]
    %v305 = vld [vmem:[#allocation2 + $0x3b8] sm:$0xff]
    %v306 = vld [vmem:[#allocation2 + $0x3c0] sm:$0xff]
    %v307 = vld [vmem:[#allocation2 + $0x3c8] sm:$0xff]
    %v308 = vld [vmem:[#allocation2 + $0x3d0] sm:$0xff]
    %v309 = vld [vmem:[#allocation2 + $0x3d8] sm:$0xff]
    %v310 = vld [vmem:[#allocation2 + $0x3e0] sm:$0xff]
    %v311 = vld [vmem:[#allocation2 + $0x3e8] sm:$0xff]
    %v312 = vld [vmem:[#allocation2 + $0x3f0] sm:$0xff]
    %v313 = vld [vmem:[#allocation2 + $0x3f8] sm:$0xff]
    %v314 = vld [vmem:[#allocation3] sm:$0xff]
    %v315 = vld [vmem:[#allocation3 + $0x8] sm:$0xff]
    %v316 = vld [vmem:[#allocation3 + $0x10] sm:$0xff]
    %v317 = vld [vmem:[#allocation3 + $0x18] sm:$0xff]
    %v318 = vld [vmem:[#allocation3 + $0x20] sm:$0xff]
    %v319 = vld [vmem:[#allocation3 + $0x28] sm:$0xff]
    %v320 = vld [vmem:[#allocation3 + $0x30] sm:$0xff]
    %v321 = vld [vmem:[#allocation3 + $0x38] sm:$0xff]
    %v322 = vld [vmem:[#allocation3 + $0x40] sm:$0xff]
    %v323 = vld [vmem:[#allocation3 + $0x48] sm:$0xff]
    %v324 = vld [vmem:[#allocation3 + $0x50] sm:$0xff]
    %v325 = vld [vmem:[#allocation3 + $0x58] sm:$0xff]
    %v326 = vld [vmem:[#allocation3 + $0x60] sm:$0xff]
    %v327 = vld [vmem:[#allocation3 + $0x68] sm:$0xff]
    %v328 = vld [vmem:[#allocation3 + $0x70] sm:$0xff]
    %v329 = vld [vmem:[#allocation3 + $0x78] sm:$0xff]
    %v330 = vld [vmem:[#allocation3 + $0x80] sm:$0xff]
    %v331 = vld [vmem:[#allocation3 + $0x88] sm:$0xff]
    %v332 = vld [vmem:[#allocation3 + $0x90] sm:$0xff]
    %v333 = vld [vmem:[#allocation3 + $0x98] sm:$0xff]
    %v334 = vld [vmem:[#allocation3 + $0xa0] sm:$0xff]
    %v335 = vld [vmem:[#allocation3 + $0xa8] sm:$0xff]
    %v336 = vld [vmem:[#allocation3 + $0xb0] sm:$0xff]
    %v337 = vld [vmem:[#allocation3 + $0xb8] sm:$0xff]
    %v338 = vld [vmem:[#allocation3 + $0xc0] sm:$0xff]
    %v339 = vld [vmem:[#allocation3 + $0xc8] sm:$0xff]
    %v340 = vld [vmem:[#allocation3 + $0xd0] sm:$0xff]
    %v341 = vld [vmem:[#allocation3 + $0xd8] sm:$0xff]
    %v342 = vld [vmem:[#allocation3 + $0xe0] sm:$0xff]
    %v343 = vld [vmem:[#allocation3 + $0xe8] sm:$0xff]
    %v344 = vld [vmem:[#allocation3 + $0xf0] sm:$0xff]
    %v345 = vld [vmem:[#allocation3 + $0xf8] sm:$0xff]
    %v346 = vld [vmem:[#allocation6] sm:$0xff]
    %v347 = vld [vmem:[#allocation6 + $0x8] sm:$0xff]
    %v348 = vld [vmem:[#allocation6 + $0x10] sm:$0xff]
    %v349 = vld [vmem:[#allocation6 + $0x18] sm:$0xff]
    %v350 = vld [vmem:[#allocation6 + $0x20] sm:$0xff]
    %v351 = vld [vmem:[#allocation6 + $0x28] sm:$0xff]
    %v352 = vld [vmem:[#allocation6 + $0x30] sm:$0xff]
    %v353 = vld [vmem:[#allocation6 + $0x38] sm:$0xff]
    %v354 = vld [vmem:[#allocation6 + $0x40] sm:$0xff]
    %v355 = vld [vmem:[#allocation6 + $0x48] sm:$0xff]
    %v356 = vld [vmem:[#allocation6 + $0x50] sm:$0xff]
    %v357 = vld [vmem:[#allocation6 + $0x58] sm:$0xff]
    %v358 = vld [vmem:[#allocation6 + $0x60] sm:$0xff]
    %v359 = vld [vmem:[#allocation6 + $0x68] sm:$0xff]
    %v360 = vld [vmem:[#allocation6 + $0x70] sm:$0xff]
    %v361 = vld [vmem:[#allocation6 + $0x78] sm:$0xff]
    %v362 = vld [vmem:[#allocation6 + $0x80] sm:$0xff]
    %v363 = vld [vmem:[#allocation6 + $0x88] sm:$0xff]
    %v364 = vld [vmem:[#allocation6 + $0x90] sm:$0xff]
    %v365 = vld [vmem:[#allocation6 + $0x98] sm:$0xff]
    %v366 = vld [vmem:[#allocation6 + $0xa0] sm:$0xff]
    %v367 = vld [vmem:[#allocation6 + $0xa8] sm:$0xff]
    %v368 = vld [vmem:[#allocation6 + $0xb0] sm:$0xff]
    %v369 = vld [vmem:[#allocation6 + $0xb8] sm:$0xff]
    %v370 = vld [vmem:[#allocation6 + $0xc0] sm:$0xff]
    %v371 = vld [vmem:[#allocation6 + $0xc8] sm:$0xff]
    %v372 = vld [vmem:[#allocation6 + $0xd0] sm:$0xff]
    %v373 = vld [vmem:[#allocation6 + $0xd8] sm:$0xff]
    %v374 = vld [vmem:[#allocation6 + $0xe0] sm:$0xff]
    %v375 = vld [vmem:[#allocation6 + $0xe8] sm:$0xff]
    %v376 = vld [vmem:[#allocation6 + $0xf0] sm:$0xff]
    %v377 = vld [vmem:[#allocation6 + $0xf8] sm:$0xff]
    %v378 = vld [vmem:[#allocation6 + $0x100] sm:$0xff]
    %v379 = vld [vmem:[#allocation6 + $0x108] sm:$0xff]
    %v380 = vld [vmem:[#allocation6 + $0x110] sm:$0xff]
    %v381 = vld [vmem:[#allocation6 + $0x118] sm:$0xff]
    %v382 = vld [vmem:[#allocation6 + $0x120] sm:$0xff]
    %v383 = vld [vmem:[#allocation6 + $0x128] sm:$0xff]
    %v384 = vld [vmem:[#allocation6 + $0x130] sm:$0xff]
    %v385 = vld [vmem:[#allocation6 + $0x138] sm:$0xff]
    %v386 = vld [vmem:[#allocation6 + $0x140] sm:$0xff]
    %v387 = vld [vmem:[#allocation6 + $0x148] sm:$0xff]
    %v388 = vld [vmem:[#allocation6 + $0x150] sm:$0xff]
    %v389 = vld [vmem:[#allocation6 + $0x158] sm:$0xff]
    %v390 = vld [vmem:[#allocation6 + $0x160] sm:$0xff]
    %v391 = vld [vmem:[#allocation6 + $0x168] sm:$0xff]
    %v392 = vld [vmem:[#allocation6 + $0x170] sm:$0xff]
    %v393 = vld [vmem:[#allocation6 + $0x178] sm:$0xff]
    %v394 = vld [vmem:[#allocation6 + $0x180] sm:$0xff]
    %v395 = vld [vmem:[#allocation6 + $0x188] sm:$0xff]
    %v396 = vld [vmem:[#allocation6 + $0x190] sm:$0xff]
    %v397 = vld [vmem:[#allocation6 + $0x198] sm:$0xff]
    %v398 = vld [vmem:[#allocation6 + $0x1a0] sm:$0xff]
    %v399 = vld [vmem:[#allocation6 + $0x1a8] sm:$0xff]
    %v400 = vld [vmem:[#allocation6 + $0x1b0] sm:$0xff]
    %v401 = vld [vmem:[#allocation6 + $0x1b8] sm:$0xff]
    %v402 = vld [vmem:[#allocation6 + $0x1c0] sm:$0xff]
    %v403 = vld [vmem:[#allocation6 + $0x1c8] sm:$0xff]
    %v404 = vld [vmem:[#allocation6 + $0x1d0] sm:$0xff]
    %v405 = vld [vmem:[#allocation6 + $0x1d8] sm:$0xff]
    %v406 = vld [vmem:[#allocation6 + $0x1e0] sm:$0xff]
    %v407 = vld [vmem:[#allocation6 + $0x1e8] sm:$0xff]
    %v408 = vld [vmem:[#allocation6 + $0x1f0] sm:$0xff]
    %v409 = vld [vmem:[#allocation6 + $0x1f8] sm:$0xff]
    %v442 = vunpack.c.l.b16 %v314
    %v443 = vunpack.c.h.b16 %v314
    %v444 = vunpack.c.l.b16 %v315
    %v445 = vunpack.c.h.b16 %v315
    %v446 = vunpack.c.l.b16 %v316
    %v447 = vunpack.c.h.b16 %v316
    %v448 = vunpack.c.l.b16 %v317
    %v449 = vunpack.c.h.b16 %v317
    %v450 = vunpack.c.l.b16 %v318
    %v451 = vunpack.c.h.b16 %v318
    %v452 = vunpack.c.l.b16 %v319
    %v453 = vunpack.c.h.b16 %v319
    %v454 = vunpack.c.l.b16 %v320
    %v455 = vunpack.c.h.b16 %v320
    %v456 = vunpack.c.l.b16 %v321
    %v457 = vunpack.c.h.b16 %v321
    %v458 = vunpack.c.l.b16 %v322
    %v459 = vunpack.c.h.b16 %v322
    %v460 = vunpack.c.l.b16 %v323
    %v461 = vunpack.c.h.b16 %v323
    %v462 = vunpack.c.l.b16 %v324
    %v463 = vunpack.c.h.b16 %v324
    %v464 = vunpack.c.l.b16 %v325
    %v465 = vunpack.c.h.b16 %v325
    %v466 = vunpack.c.l.b16 %v326
    %v467 = vunpack.c.h.b16 %v326
    %v468 = vunpack.c.l.b16 %v327
    %v469 = vunpack.c.h.b16 %v327
    %v470 = vunpack.c.l.b16 %v328
    %v471 = vunpack.c.h.b16 %v328
    %v472 = vunpack.c.l.b16 %v329
    %v473 = vunpack.c.h.b16 %v329
    %v474 = vunpack.c.l.b16 %v330
    %v475 = vunpack.c.h.b16 %v330
    %v476 = vunpack.c.l.b16 %v331
    %v477 = vunpack.c.h.b16 %v331
    %v478 = vunpack.c.l.b16 %v332
    %v479 = vunpack.c.h.b16 %v332
    %v480 = vunpack.c.l.b16 %v333
    %v481 = vunpack.c.h.b16 %v333
    %v482 = vunpack.c.l.b16 %v334
    %v483 = vunpack.c.h.b16 %v334
    %v484 = vunpack.c.l.b16 %v335
    %v485 = vunpack.c.h.b16 %v335
    %v486 = vunpack.c.l.b16 %v336
    %v487 = vunpack.c.h.b16 %v336
    %v488 = vunpack.c.l.b16 %v337
    %v489 = vunpack.c.h.b16 %v337
    %v490 = vunpack.c.l.b16 %v338
    %v491 = vunpack.c.h.b16 %v338
    %v492 = vunpack.c.l.b16 %v339
    %v493 = vunpack.c.h.b16 %v339
    %v494 = vunpack.c.l.b16 %v340
    %v495 = vunpack.c.h.b16 %v340
    %v496 = vunpack.c.l.b16 %v341
    %v497 = vunpack.c.h.b16 %v341
    %v498 = vunpack.c.l.b16 %v342
    %v499 = vunpack.c.h.b16 %v342
    %v500 = vunpack.c.l.b16 %v343
    %v501 = vunpack.c.h.b16 %v343
    %v502 = vunpack.c.l.b16 %v344
    %v503 = vunpack.c.h.b16 %v344
    %v504 = vunpack.c.l.b16 %v345
    %v505 = vunpack.c.h.b16 %v345
    %v506 = vpack.c.b16 %v444, %v442
    %v507 = vpack.c.b16 %v445, %v443
    %v508 = vpack.c.b16 %v448, %v446
    %v509 = vpack.c.b16 %v449, %v447
    %v510 = vpack.c.b16 %v452, %v450
    %v511 = vpack.c.b16 %v453, %v451
    %v512 = vpack.c.b16 %v456, %v454
    %v513 = vpack.c.b16 %v457, %v455
    %v514 = vpack.c.b16 %v460, %v458
    %v515 = vpack.c.b16 %v461, %v459
    %v516 = vpack.c.b16 %v464, %v462
    %v517 = vpack.c.b16 %v465, %v463
    %v518 = vpack.c.b16 %v468, %v466
    %v519 = vpack.c.b16 %v469, %v467
    %v520 = vpack.c.b16 %v472, %v470
    %v521 = vpack.c.b16 %v473, %v471
    %v522 = vpack.c.b16 %v476, %v474
    %v523 = vpack.c.b16 %v477, %v475
    %v524 = vpack.c.b16 %v480, %v478
    %v525 = vpack.c.b16 %v481, %v479
    %v526 = vpack.c.b16 %v484, %v482
    %v527 = vpack.c.b16 %v485, %v483
    %v528 = vpack.c.b16 %v488, %v486
    %v529 = vpack.c.b16 %v489, %v487
    %v530 = vpack.c.b16 %v492, %v490
    %v531 = vpack.c.b16 %v493, %v491
    %v532 = vpack.c.b16 %v496, %v494
    %v533 = vpack.c.b16 %v497, %v495
    %v534 = vpack.c.b16 %v500, %v498
    %v535 = vpack.c.b16 %v501, %v499
    %v536 = vpack.c.b16 %v504, %v502
    %v537 = vpack.c.b16 %v505, %v503
    %v634 = vunpack.c.l.b16 %v346
    %v635 = vunpack.c.h.b16 %v346
    %v636 = vunpack.c.l.b16 %v347
    %v637 = vunpack.c.h.b16 %v347
    %v638 = vunpack.c.l.b16 %v348
    %v639 = vunpack.c.h.b16 %v348
    %v640 = vunpack.c.l.b16 %v349
    %v641 = vunpack.c.h.b16 %v349
    %v642 = vunpack.c.l.b16 %v350
    %v643 = vunpack.c.h.b16 %v350
    %v644 = vunpack.c.l.b16 %v351
    %v645 = vunpack.c.h.b16 %v351
    %v646 = vunpack.c.l.b16 %v352
    %v647 = vunpack.c.h.b16 %v352
    %v648 = vunpack.c.l.b16 %v353
    %v649 = vunpack.c.h.b16 %v353
    %v650 = vunpack.c.l.b16 %v354
    %v651 = vunpack.c.h.b16 %v354
    %v652 = vunpack.c.l.b16 %v355
    %v653 = vunpack.c.h.b16 %v355
    %v654 = vunpack.c.l.b16 %v356
    %v655 = vunpack.c.h.b16 %v356
    %v656 = vunpack.c.l.b16 %v357
    %v657 = vunpack.c.h.b16 %v357
    %v658 = vunpack.c.l.b16 %v358
    %v659 = vunpack.c.h.b16 %v358
    %v660 = vunpack.c.l.b16 %v359
    %v661 = vunpack.c.h.b16 %v359
    %v662 = vunpack.c.l.b16 %v360
    %v663 = vunpack.c.h.b16 %v360
    %v664 = vunpack.c.l.b16 %v361
    %v665 = vunpack.c.h.b16 %v361
    %v666 = vunpack.c.l.b16 %v362
    %v667 = vunpack.c.h.b16 %v362
    %v668 = vunpack.c.l.b16 %v363
    %v669 = vunpack.c.h.b16 %v363
    %v670 = vunpack.c.l.b16 %v364
    %v671 = vunpack.c.h.b16 %v364
    %v672 = vunpack.c.l.b16 %v365
    %v673 = vunpack.c.h.b16 %v365
    %v674 = vunpack.c.l.b16 %v366
    %v675 = vunpack.c.h.b16 %v366
    %v676 = vunpack.c.l.b16 %v367
    %v677 = vunpack.c.h.b16 %v367
    %v678 = vunpack.c.l.b16 %v368
    %v679 = vunpack.c.h.b16 %v368
    %v680 = vunpack.c.l.b16 %v369
    %v681 = vunpack.c.h.b16 %v369
    %v682 = vunpack.c.l.b16 %v370
    %v683 = vunpack.c.h.b16 %v370
    %v684 = vunpack.c.l.b16 %v371
    %v685 = vunpack.c.h.b16 %v371
    %v686 = vunpack.c.l.b16 %v372
    %v687 = vunpack.c.h.b16 %v372
    %v688 = vunpack.c.l.b16 %v373
    %v689 = vunpack.c.h.b16 %v373
    %v690 = vunpack.c.l.b16 %v374
    %v691 = vunpack.c.h.b16 %v374
    %v692 = vunpack.c.l.b16 %v375
    %v693 = vunpack.c.h.b16 %v375
    %v694 = vunpack.c.l.b16 %v376
    %v695 = vunpack.c.h.b16 %v376
    %v696 = vunpack.c.l.b16 %v377
    %v697 = vunpack.c.h.b16 %v377
    %v698 = vunpack.c.l.b16 %v378
    %v699 = vunpack.c.h.b16 %v378
    %v700 = vunpack.c.l.b16 %v379
    %v701 = vunpack.c.h.b16 %v379
    %v702 = vunpack.c.l.b16 %v380
    %v703 = vunpack.c.h.b16 %v380
    %v704 = vunpack.c.l.b16 %v381
    %v705 = vunpack.c.h.b16 %v381
    %v706 = vunpack.c.l.b16 %v382
    %v707 = vunpack.c.h.b16 %v382
    %v708 = vunpack.c.l.b16 %v383
    %v709 = vunpack.c.h.b16 %v383
    %v710 = vunpack.c.l.b16 %v384
    %v711 = vunpack.c.h.b16 %v384
    %v712 = vunpack.c.l.b16 %v385
    %v713 = vunpack.c.h.b16 %v385
    %v714 = vunpack.c.l.b16 %v386
    %v715 = vunpack.c.h.b16 %v386
    %v716 = vunpack.c.l.b16 %v387
    %v717 = vunpack.c.h.b16 %v387
    %v718 = vunpack.c.l.b16 %v388
    %v719 = vunpack.c.h.b16 %v388
    %v720 = vunpack.c.l.b16 %v389
    %v721 = vunpack.c.h.b16 %v389
    %v722 = vunpack.c.l.b16 %v390
    %v723 = vunpack.c.h.b16 %v390
    %v724 = vunpack.c.l.b16 %v391
    %v725 = vunpack.c.h.b16 %v391
    %v726 = vunpack.c.l.b16 %v392
    %v727 = vunpack.c.h.b16 %v392
    %v728 = vunpack.c.l.b16 %v393
    %v729 = vunpack.c.h.b16 %v393
    %v730 = vunpack.c.l.b16 %v394
    %v731 = vunpack.c.h.b16 %v394
    %v732 = vunpack.c.l.b16 %v395
    %v733 = vunpack.c.h.b16 %v395
    %v734 = vunpack.c.l.b16 %v396
    %v735 = vunpack.c.h.b16 %v396
    %v736 = vunpack.c.l.b16 %v397
    %v737 = vunpack.c.h.b16 %v397
    %v738 = vunpack.c.l.b16 %v398
    %v739 = vunpack.c.h.b16 %v398
    %v740 = vunpack.c.l.b16 %v399
    %v741 = vunpack.c.h.b16 %v399
    %v742 = vunpack.c.l.b16 %v400
    %v743 = vunpack.c.h.b16 %v400
    %v744 = vunpack.c.l.b16 %v401
    %v745 = vunpack.c.h.b16 %v401
    %v746 = vunpack.c.l.b16 %v402
    %v747 = vunpack.c.h.b16 %v402
    %v748 = vunpack.c.l.b16 %v403
    %v749 = vunpack.c.h.b16 %v403
    %v750 = vunpack.c.l.b16 %v404
    %v751 = vunpack.c.h.b16 %v404
    %v752 = vunpack.c.l.b16 %v405
    %v753 = vunpack.c.h.b16 %v405
    %v754 = vunpack.c.l.b16 %v406
    %v755 = vunpack.c.h.b16 %v406
    %v756 = vunpack.c.l.b16 %v407
    %v757 = vunpack.c.h.b16 %v407
    %v758 = vunpack.c.l.b16 %v408
    %v759 = vunpack.c.h.b16 %v408
    %v760 = vunpack.c.l.b16 %v409
    %v761 = vunpack.c.h.b16 %v409
    %v762 = vpack.c.b16 %v638, %v634
    %v763 = vpack.c.b16 %v639, %v635
    %v764 = vpack.c.b16 %v640, %v636
    %v765 = vpack.c.b16 %v641, %v637
    %v766 = vpack.c.b16 %v646, %v642
    %v767 = vpack.c.b16 %v647, %v643
    %v768 = vpack.c.b16 %v648, %v644
    %v769 = vpack.c.b16 %v649, %v645
    %v770 = vpack.c.b16 %v654, %v650
    %v771 = vpack.c.b16 %v655, %v651
    %v772 = vpack.c.b16 %v656, %v652
    %v773 = vpack.c.b16 %v657, %v653
    %v774 = vpack.c.b16 %v662, %v658
    %v775 = vpack.c.b16 %v663, %v659
    %v776 = vpack.c.b16 %v664, %v660
    %v777 = vpack.c.b16 %v665, %v661
    %v778 = vpack.c.b16 %v670, %v666
    %v779 = vpack.c.b16 %v671, %v667
    %v780 = vpack.c.b16 %v672, %v668
    %v781 = vpack.c.b16 %v673, %v669
    %v782 = vpack.c.b16 %v678, %v674
    %v783 = vpack.c.b16 %v679, %v675
    %v784 = vpack.c.b16 %v680, %v676
    %v785 = vpack.c.b16 %v681, %v677
    %v786 = vpack.c.b16 %v686, %v682
    %v787 = vpack.c.b16 %v687, %v683
    %v788 = vpack.c.b16 %v688, %v684
    %v789 = vpack.c.b16 %v689, %v685
    %v790 = vpack.c.b16 %v694, %v690
    %v791 = vpack.c.b16 %v695, %v691
    %v792 = vpack.c.b16 %v696, %v692
    %v793 = vpack.c.b16 %v697, %v693
    %v794 = vpack.c.b16 %v702, %v698
    %v795 = vpack.c.b16 %v703, %v699
    %v796 = vpack.c.b16 %v704, %v700
    %v797 = vpack.c.b16 %v705, %v701
    %v798 = vpack.c.b16 %v710, %v706
    %v799 = vpack.c.b16 %v711, %v707
    %v800 = vpack.c.b16 %v712, %v708
    %v801 = vpack.c.b16 %v713, %v709
    %v802 = vpack.c.b16 %v718, %v714
    %v803 = vpack.c.b16 %v719, %v715
    %v804 = vpack.c.b16 %v720, %v716
    %v805 = vpack.c.b16 %v721, %v717
    %v806 = vpack.c.b16 %v726, %v722
    %v807 = vpack.c.b16 %v727, %v723
    %v808 = vpack.c.b16 %v728, %v724
    %v809 = vpack.c.b16 %v729, %v725
    %v810 = vpack.c.b16 %v734, %v730
    %v811 = vpack.c.b16 %v735, %v731
    %v812 = vpack.c.b16 %v736, %v732
    %v813 = vpack.c.b16 %v737, %v733
    %v814 = vpack.c.b16 %v742, %v738
    %v815 = vpack.c.b16 %v743, %v739
    %v816 = vpack.c.b16 %v744, %v740
    %v817 = vpack.c.b16 %v745, %v741
    %v818 = vpack.c.b16 %v750, %v746
    %v819 = vpack.c.b16 %v751, %v747
    %v820 = vpack.c.b16 %v752, %v748
    %v821 = vpack.c.b16 %v753, %v749
    %v822 = vpack.c.b16 %v758, %v754
    %v823 = vpack.c.b16 %v759, %v755
    %v824 = vpack.c.b16 %v760, %v756
    %v825 = vpack.c.b16 %v761, %v757
    %890 = vmatprep.subr.bf16.mxu0 %v791
    %891 = vmatpush1.bf16.msra.mxu0 %v790
    %892 = vmatprep.subr.bf16.mxu0 %v787
    %893 = vmatpush1.bf16.msra.mxu0 %v786
    %894 = vmatprep.subr.bf16.mxu0 %v783
    %895 = vmatpush1.bf16.msra.mxu0 %v782
    %896 = vmatprep.subr.bf16.mxu0 %v779
    %897 = vmatpush1.bf16.msra.mxu0 %v778
    %898 = vmatprep.subr.bf16.mxu0 %v775
    %899 = vmatpush1.bf16.msra.mxu0 %v774
    %900 = vmatprep.subr.bf16.mxu0 %v771
    %901 = vmatpush1.bf16.msra.mxu0 %v770
    %902 = vmatprep.subr.bf16.mxu0 %v767
    %903 = vmatpush1.bf16.msra.mxu0 %v766
    %904 = vmatprep.subr.bf16.mxu0 %v763
    %905 = vmatpush1.bf16.msra.mxu0 %v762
    %906 = vmatprep.subr.bf16.mxu0 %v823
    %907 = vmatpush2.bf16.msra.mxu0 %v822
    %908 = vmatprep.subr.bf16.mxu0 %v819
    %909 = vmatpush2.bf16.msra.mxu0 %v818
    %910 = vmatprep.subr.bf16.mxu0 %v815
    %911 = vmatpush2.bf16.msra.mxu0 %v814
    %912 = vmatprep.subr.bf16.mxu0 %v811
    %913 = vmatpush2.bf16.msra.mxu0 %v810
    %914 = vmatprep.subr.bf16.mxu0 %v807
    %915 = vmatpush2.bf16.msra.mxu0 %v806
    %916 = vmatprep.subr.bf16.mxu0 %v803
    %917 = vmatpush2.bf16.msra.mxu0 %v802
    %918 = vmatprep.subr.bf16.mxu0 %v799
    %919 = vmatpush2.bf16.msra.mxu0 %v798
    %920 = vmatprep.subr.bf16.mxu0 %v795
    %921 = vmatpush2.bf16.msra.mxu0 %v794
    %922 = vmatprep.mubr.bf16.mxu0 %v507
    %923 = vmatmul.mubr.bf16.gmra.mxu0 %v506
    %v924 = vpop.f32.mrf.mxu0
    %v925 = vadd.f32 0.0, %v924
    %v926 = vpop.f32.mrf.mxu0
    %v927 = vadd.f32 0.0, %v926
    %v928 = vpop.f32.mrf.mxu0
    %v929 = vadd.f32 0.0, %v928
    %v930 = vpop.f32.mrf.mxu0
    %v931 = vadd.f32 0.0, %v930
    %932 = vmatprep.mubr.bf16.mxu0 %v509
    %933 = vmatmul.mubr.bf16.gmra.mxu0 %v508
    %v934 = vpop.f32.mrf.mxu0
    %v935 = vadd.f32 0.0, %v934
    %v936 = vpop.f32.mrf.mxu0
    %v937 = vadd.f32 0.0, %v936
    %v938 = vpop.f32.mrf.mxu0
    %v939 = vadd.f32 0.0, %v938
    %v940 = vpop.f32.mrf.mxu0
    %v941 = vadd.f32 0.0, %v940
    %942 = vmatprep.mubr.bf16.mxu0 %v511
    %943 = vmatmul.mubr.bf16.gmra.mxu0 %v510
    %v944 = vpop.f32.mrf.mxu0
    %v945 = vadd.f32 0.0, %v944
    %v946 = vpop.f32.mrf.mxu0
    %v947 = vadd.f32 0.0, %v946
    %v948 = vpop.f32.mrf.mxu0
    %v949 = vadd.f32 0.0, %v948
    %v950 = vpop.f32.mrf.mxu0
    %v951 = vadd.f32 0.0, %v950
    %952 = vmatprep.mubr.bf16.mxu0 %v513
    %953 = vmatmul.mubr.bf16.gmra.mxu0 %v512
    %v954 = vpop.f32.mrf.mxu0
    %v955 = vadd.f32 0.0, %v954
    %v956 = vpop.f32.mrf.mxu0
    %v957 = vadd.f32 0.0, %v956
    %v958 = vpop.f32.mrf.mxu0
    %v959 = vadd.f32 0.0, %v958
    %v960 = vpop.f32.mrf.mxu0
    %v961 = vadd.f32 0.0, %v960
    %962 = vmatprep.mubr.bf16.mxu0 %v515
    %963 = vmatmul.mubr.bf16.gmra.mxu0 %v514
    %v964 = vpop.f32.mrf.mxu0
    %v965 = vadd.f32 0.0, %v964
    %v966 = vpop.f32.mrf.mxu0
    %v967 = vadd.f32 0.0, %v966
    %v968 = vpop.f32.mrf.mxu0
    %v969 = vadd.f32 0.0, %v968
    %v970 = vpop.f32.mrf.mxu0
    %v971 = vadd.f32 0.0, %v970
    %972 = vmatprep.mubr.bf16.mxu0 %v517
    %973 = vmatmul.mubr.bf16.gmra.mxu0 %v516
    %v974 = vpop.f32.mrf.mxu0
    %v975 = vadd.f32 0.0, %v974
    %v976 = vpop.f32.mrf.mxu0
    %v977 = vadd.f32 0.0, %v976
    %v978 = vpop.f32.mrf.mxu0
    %v979 = vadd.f32 0.0, %v978
    %v980 = vpop.f32.mrf.mxu0
    %v981 = vadd.f32 0.0, %v980
    %982 = vmatprep.mubr.bf16.mxu0 %v519
    %983 = vmatmul.mubr.bf16.gmra.mxu0 %v518
    %v984 = vpop.f32.mrf.mxu0
    %v985 = vadd.f32 0.0, %v984
    %v986 = vpop.f32.mrf.mxu0
    %v987 = vadd.f32 0.0, %v986
    %v988 = vpop.f32.mrf.mxu0
    %v989 = vadd.f32 0.0, %v988
    %v990 = vpop.f32.mrf.mxu0
    %v991 = vadd.f32 0.0, %v990
    %992 = vmatprep.mubr.bf16.mxu0 %v521
    %993 = vmatmul.mubr.bf16.gmra.mxu0 %v520
    %v994 = vpop.f32.mrf.mxu0
    %v995 = vadd.f32 0.0, %v994
    %v996 = vpop.f32.mrf.mxu0
    %v997 = vadd.f32 0.0, %v996
    %v998 = vpop.f32.mrf.mxu0
    %v999 = vadd.f32 0.0, %v998
    %v1000 = vpop.f32.mrf.mxu0
    %v1001 = vadd.f32 0.0, %v1000
    %1002 = vmatprep.mubr.bf16.mxu0 %v523
    %1003 = vmatmul.mubr.bf16.gmra.mxu0 %v522
    %v1004 = vpop.f32.mrf.mxu0
    %v1005 = vadd.f32 0.0, %v1004
    %v1006 = vpop.f32.mrf.mxu0
    %v1007 = vadd.f32 0.0, %v1006
    %v1008 = vpop.f32.mrf.mxu0
    %v1009 = vadd.f32 0.0, %v1008
    %v1010 = vpop.f32.mrf.mxu0
    %v1011 = vadd.f32 0.0, %v1010
    %1012 = vmatprep.mubr.bf16.mxu0 %v525
    %1013 = vmatmul.mubr.bf16.gmra.mxu0 %v524
    %v1014 = vpop.f32.mrf.mxu0
    %v1015 = vadd.f32 0.0, %v1014
    %v1016 = vpop.f32.mrf.mxu0
    %v1017 = vadd.f32 0.0, %v1016
    %v1018 = vpop.f32.mrf.mxu0
    %v1019 = vadd.f32 0.0, %v1018
    %v1020 = vpop.f32.mrf.mxu0
    %v1021 = vadd.f32 0.0, %v1020
    %1022 = vmatprep.mubr.bf16.mxu0 %v527
    %1023 = vmatmul.mubr.bf16.gmra.mxu0 %v526
    %v1024 = vpop.f32.mrf.mxu0
    %v1025 = vadd.f32 0.0, %v1024
    %v1026 = vpop.f32.mrf.mxu0
    %v1027 = vadd.f32 0.0, %v1026
    %v1028 = vpop.f32.mrf.mxu0
    %v1029 = vadd.f32 0.0, %v1028
    %v1030 = vpop.f32.mrf.mxu0
    %v1031 = vadd.f32 0.0, %v1030
    %1032 = vmatprep.mubr.bf16.mxu0 %v529
    %1033 = vmatmul.mubr.bf16.gmra.mxu0 %v528
    %v1034 = vpop.f32.mrf.mxu0
    %v1035 = vadd.f32 0.0, %v1034
    %v1036 = vpop.f32.mrf.mxu0
    %v1037 = vadd.f32 0.0, %v1036
    %v1038 = vpop.f32.mrf.mxu0
    %v1039 = vadd.f32 0.0, %v1038
    %v1040 = vpop.f32.mrf.mxu0
    %v1041 = vadd.f32 0.0, %v1040
    %1042 = vmatprep.mubr.bf16.mxu0 %v531
    %1043 = vmatmul.mubr.bf16.gmra.mxu0 %v530
    %v1044 = vpop.f32.mrf.mxu0
    %v1045 = vadd.f32 0.0, %v1044
    %v1046 = vpop.f32.mrf.mxu0
    %v1047 = vadd.f32 0.0, %v1046
    %v1048 = vpop.f32.mrf.mxu0
    %v1049 = vadd.f32 0.0, %v1048
    %v1050 = vpop.f32.mrf.mxu0
    %v1051 = vadd.f32 0.0, %v1050
    %1052 = vmatprep.mubr.bf16.mxu0 %v533
    %1053 = vmatmul.mubr.bf16.gmra.mxu0 %v532
    %v1054 = vpop.f32.mrf.mxu0
    %v1055 = vadd.f32 0.0, %v1054
    %v1056 = vpop.f32.mrf.mxu0
    %v1057 = vadd.f32 0.0, %v1056
    %v1058 = vpop.f32.mrf.mxu0
    %v1059 = vadd.f32 0.0, %v1058
    %v1060 = vpop.f32.mrf.mxu0
    %v1061 = vadd.f32 0.0, %v1060
    %1062 = vmatprep.mubr.bf16.mxu0 %v535
    %1063 = vmatmul.mubr.bf16.gmra.mxu0 %v534
    %v1064 = vpop.f32.mrf.mxu0
    %v1065 = vadd.f32 0.0, %v1064
    %v1066 = vpop.f32.mrf.mxu0
    %v1067 = vadd.f32 0.0, %v1066
    %v1068 = vpop.f32.mrf.mxu0
    %v1069 = vadd.f32 0.0, %v1068
    %v1070 = vpop.f32.mrf.mxu0
    %v1071 = vadd.f32 0.0, %v1070
    %1072 = vmatprep.mubr.bf16.mxu0 %v537
    %1073 = vmatmul.mubr.bf16.gmra.mxu0 %v536
    %v1074 = vpop.f32.mrf.mxu0
    %v1075 = vadd.f32 0.0, %v1074
    %v1076 = vpop.f32.mrf.mxu0
    %v1077 = vadd.f32 0.0, %v1076
    %v1078 = vpop.f32.mrf.mxu0
    %v1079 = vadd.f32 0.0, %v1078
    %v1080 = vpop.f32.mrf.mxu0
    %v1081 = vadd.f32 0.0, %v1080
    %1082 = vdwg.mxu0
    %1083 = vmatprep.subr.bf16.mxu0 %v793
    %1084 = vmatpush1.bf16.msra.mxu0 %v792
    %1085 = vmatprep.subr.bf16.mxu0 %v789
    %1086 = vmatpush1.bf16.msra.mxu0 %v788
    %1087 = vmatprep.subr.bf16.mxu0 %v785
    %1088 = vmatpush1.bf16.msra.mxu0 %v784
    %1089 = vmatprep.subr.bf16.mxu0 %v781
    %1090 = vmatpush1.bf16.msra.mxu0 %v780
    %1091 = vmatprep.subr.bf16.mxu0 %v777
    %1092 = vmatpush1.bf16.msra.mxu0 %v776
    %1093 = vmatprep.subr.bf16.mxu0 %v773
    %1094 = vmatpush1.bf16.msra.mxu0 %v772
    %1095 = vmatprep.subr.bf16.mxu0 %v769
    %1096 = vmatpush1.bf16.msra.mxu0 %v768
    %1097 = vmatprep.subr.bf16.mxu0 %v765
    %1098 = vmatpush1.bf16.msra.mxu0 %v764
    %1099 = vmatprep.subr.bf16.mxu0 %v825
    %1100 = vmatpush2.bf16.msra.mxu0 %v824
    %1101 = vmatprep.subr.bf16.mxu0 %v821
    %1102 = vmatpush2.bf16.msra.mxu0 %v820
    %1103 = vmatprep.subr.bf16.mxu0 %v817
    %1104 = vmatpush2.bf16.msra.mxu0 %v816
    %1105 = vmatprep.subr.bf16.mxu0 %v813
    %1106 = vmatpush2.bf16.msra.mxu0 %v812
    %1107 = vmatprep.subr.bf16.mxu0 %v809
    %1108 = vmatpush2.bf16.msra.mxu0 %v808
    %1109 = vmatprep.subr.bf16.mxu0 %v805
    %1110 = vmatpush2.bf16.msra.mxu0 %v804
    %1111 = vmatprep.subr.bf16.mxu0 %v801
    %1112 = vmatpush2.bf16.msra.mxu0 %v800
    %1113 = vmatprep.subr.bf16.mxu0 %v797
    %1114 = vmatpush2.bf16.msra.mxu0 %v796
    %1115 = vmatprep.mubr.bf16.mxu0 %v507
    %1116 = vmatmul.mubr.bf16.gmra.mxu0 %v506
    %v1117 = vpop.f32.mrf.mxu0
    %v1118 = vadd.f32 0.0, %v1117
    %v1119 = vpop.f32.mrf.mxu0
    %v1120 = vadd.f32 0.0, %v1119
    %v1121 = vpop.f32.mrf.mxu0
    %v1122 = vadd.f32 0.0, %v1121
    %v1123 = vpop.f32.mrf.mxu0
    %v1124 = vadd.f32 0.0, %v1123
    %1125 = vmatprep.mubr.bf16.mxu0 %v509
    %1126 = vmatmul.mubr.bf16.gmra.mxu0 %v508
    %v1127 = vpop.f32.mrf.mxu0
    %v1128 = vadd.f32 0.0, %v1127
    %v1129 = vpop.f32.mrf.mxu0
    %v1130 = vadd.f32 0.0, %v1129
    %v1131 = vpop.f32.mrf.mxu0
    %v1132 = vadd.f32 0.0, %v1131
    %v1133 = vpop.f32.mrf.mxu0
    %v1134 = vadd.f32 0.0, %v1133
    %1135 = vmatprep.mubr.bf16.mxu0 %v511
    %1136 = vmatmul.mubr.bf16.gmra.mxu0 %v510
    %v1137 = vpop.f32.mrf.mxu0
    %v1138 = vadd.f32 0.0, %v1137
    %v1139 = vpop.f32.mrf.mxu0
    %v1140 = vadd.f32 0.0, %v1139
    %v1141 = vpop.f32.mrf.mxu0
    %v1142 = vadd.f32 0.0, %v1141
    %v1143 = vpop.f32.mrf.mxu0
    %v1144 = vadd.f32 0.0, %v1143
    %1145 = vmatprep.mubr.bf16.mxu0 %v513
    %1146 = vmatmul.mubr.bf16.gmra.mxu0 %v512
    %v1147 = vpop.f32.mrf.mxu0
    %v1148 = vadd.f32 0.0, %v1147
    %v1149 = vpop.f32.mrf.mxu0
    %v1150 = vadd.f32 0.0, %v1149
    %v1151 = vpop.f32.mrf.mxu0
    %v1152 = vadd.f32 0.0, %v1151
    %v1153 = vpop.f32.mrf.mxu0
    %v1154 = vadd.f32 0.0, %v1153
    %1155 = vmatprep.mubr.bf16.mxu0 %v515
    %1156 = vmatmul.mubr.bf16.gmra.mxu0 %v514
    %v1157 = vpop.f32.mrf.mxu0
    %v1158 = vadd.f32 0.0, %v1157
    %v1159 = vpop.f32.mrf.mxu0
    %v1160 = vadd.f32 0.0, %v1159
    %v1161 = vpop.f32.mrf.mxu0
    %v1162 = vadd.f32 0.0, %v1161
    %v1163 = vpop.f32.mrf.mxu0
    %v1164 = vadd.f32 0.0, %v1163
    %1165 = vmatprep.mubr.bf16.mxu0 %v517
    %1166 = vmatmul.mubr.bf16.gmra.mxu0 %v516
    %v1167 = vpop.f32.mrf.mxu0
    %v1168 = vadd.f32 0.0, %v1167
    %v1169 = vpop.f32.mrf.mxu0
    %v1170 = vadd.f32 0.0, %v1169
    %v1171 = vpop.f32.mrf.mxu0
    %v1172 = vadd.f32 0.0, %v1171
    %v1173 = vpop.f32.mrf.mxu0
    %v1174 = vadd.f32 0.0, %v1173
    %1175 = vmatprep.mubr.bf16.mxu0 %v519
    %1176 = vmatmul.mubr.bf16.gmra.mxu0 %v518
    %v1177 = vpop.f32.mrf.mxu0
    %v1178 = vadd.f32 0.0, %v1177
    %v1179 = vpop.f32.mrf.mxu0
    %v1180 = vadd.f32 0.0, %v1179
    %v1181 = vpop.f32.mrf.mxu0
    %v1182 = vadd.f32 0.0, %v1181
    %v1183 = vpop.f32.mrf.mxu0
    %v1184 = vadd.f32 0.0, %v1183
    %1185 = vmatprep.mubr.bf16.mxu0 %v521
    %1186 = vmatmul.mubr.bf16.gmra.mxu0 %v520
    %v1187 = vpop.f32.mrf.mxu0
    %v1188 = vadd.f32 0.0, %v1187
    %v1189 = vpop.f32.mrf.mxu0
    %v1190 = vadd.f32 0.0, %v1189
    %v1191 = vpop.f32.mrf.mxu0
    %v1192 = vadd.f32 0.0, %v1191
    %v1193 = vpop.f32.mrf.mxu0
    %v1194 = vadd.f32 0.0, %v1193
    %1195 = vmatprep.mubr.bf16.mxu0 %v523
    %1196 = vmatmul.mubr.bf16.gmra.mxu0 %v522
    %v1197 = vpop.f32.mrf.mxu0
    %v1198 = vadd.f32 0.0, %v1197
    %v1199 = vpop.f32.mrf.mxu0
    %v1200 = vadd.f32 0.0, %v1199
    %v1201 = vpop.f32.mrf.mxu0
    %v1202 = vadd.f32 0.0, %v1201
    %v1203 = vpop.f32.mrf.mxu0
    %v1204 = vadd.f32 0.0, %v1203
    %1205 = vmatprep.mubr.bf16.mxu0 %v525
    %1206 = vmatmul.mubr.bf16.gmra.mxu0 %v524
    %v1207 = vpop.f32.mrf.mxu0
    %v1208 = vadd.f32 0.0, %v1207
    %v1209 = vpop.f32.mrf.mxu0
    %v1210 = vadd.f32 0.0, %v1209
    %v1211 = vpop.f32.mrf.mxu0
    %v1212 = vadd.f32 0.0, %v1211
    %v1213 = vpop.f32.mrf.mxu0
    %v1214 = vadd.f32 0.0, %v1213
    %1215 = vmatprep.mubr.bf16.mxu0 %v527
    %1216 = vmatmul.mubr.bf16.gmra.mxu0 %v526
    %v1217 = vpop.f32.mrf.mxu0
    %v1218 = vadd.f32 0.0, %v1217
    %v1219 = vpop.f32.mrf.mxu0
    %v1220 = vadd.f32 0.0, %v1219
    %v1221 = vpop.f32.mrf.mxu0
    %v1222 = vadd.f32 0.0, %v1221
    %v1223 = vpop.f32.mrf.mxu0
    %v1224 = vadd.f32 0.0, %v1223
    %1225 = vmatprep.mubr.bf16.mxu0 %v529
    %1226 = vmatmul.mubr.bf16.gmra.mxu0 %v528
    %v1227 = vpop.f32.mrf.mxu0
    %v1228 = vadd.f32 0.0, %v1227
    %v1229 = vpop.f32.mrf.mxu0
    %v1230 = vadd.f32 0.0, %v1229
    %v1231 = vpop.f32.mrf.mxu0
    %v1232 = vadd.f32 0.0, %v1231
    %v1233 = vpop.f32.mrf.mxu0
    %v1234 = vadd.f32 0.0, %v1233
    %1235 = vmatprep.mubr.bf16.mxu0 %v531
    %1236 = vmatmul.mubr.bf16.gmra.mxu0 %v530
    %v1237 = vpop.f32.mrf.mxu0
    %v1238 = vadd.f32 0.0, %v1237
    %v1239 = vpop.f32.mrf.mxu0
    %v1240 = vadd.f32 0.0, %v1239
    %v1241 = vpop.f32.mrf.mxu0
    %v1242 = vadd.f32 0.0, %v1241
    %v1243 = vpop.f32.mrf.mxu0
    %v1244 = vadd.f32 0.0, %v1243
    %1245 = vmatprep.mubr.bf16.mxu0 %v533
    %1246 = vmatmul.mubr.bf16.gmra.mxu0 %v532
    %v1247 = vpop.f32.mrf.mxu0
    %v1248 = vadd.f32 0.0, %v1247
    %v1249 = vpop.f32.mrf.mxu0
    %v1250 = vadd.f32 0.0, %v1249
    %v1251 = vpop.f32.mrf.mxu0
    %v1252 = vadd.f32 0.0, %v1251
    %v1253 = vpop.f32.mrf.mxu0
    %v1254 = vadd.f32 0.0, %v1253
    %1255 = vmatprep.mubr.bf16.mxu0 %v535
    %1256 = vmatmul.mubr.bf16.gmra.mxu0 %v534
    %v1257 = vpop.f32.mrf.mxu0
    %v1258 = vadd.f32 0.0, %v1257
    %v1259 = vpop.f32.mrf.mxu0
    %v1260 = vadd.f32 0.0, %v1259
    %v1261 = vpop.f32.mrf.mxu0
    %v1262 = vadd.f32 0.0, %v1261
    %v1263 = vpop.f32.mrf.mxu0
    %v1264 = vadd.f32 0.0, %v1263
    %1265 = vmatprep.mubr.bf16.mxu0 %v537
    %1266 = vmatmul.mubr.bf16.gmra.mxu0 %v536
    %v1267 = vpop.f32.mrf.mxu0
    %v1268 = vadd.f32 0.0, %v1267
    %v1269 = vpop.f32.mrf.mxu0
    %v1270 = vadd.f32 0.0, %v1269
    %v1271 = vpop.f32.mrf.mxu0
    %v1272 = vadd.f32 0.0, %v1271
    %v1273 = vpop.f32.mrf.mxu0
    %v1274 = vadd.f32 0.0, %v1273
    %1275 = vdwg.mxu0
    %v1276 = vadd.f32 %v186, %v925
    %v1277 = vadd.f32 %v187, %v927
    %v1278 = vadd.f32 %v188, %v1118
    %v1279 = vadd.f32 %v189, %v1120
    %v1280 = vadd.f32 %v190, %v929
    %v1281 = vadd.f32 %v191, %v931
    %v1282 = vadd.f32 %v192, %v1122
    %v1283 = vadd.f32 %v193, %v1124
    %v1284 = vadd.f32 %v194, %v935
    %v1285 = vadd.f32 %v195, %v937
    %v1286 = vadd.f32 %v196, %v1128
    %v1287 = vadd.f32 %v197, %v1130
    %v1288 = vadd.f32 %v198, %v939
    %v1289 = vadd.f32 %v199, %v941
    %v1290 = vadd.f32 %v200, %v1132
    %v1291 = vadd.f32 %v201, %v1134
    %v1292 = vadd.f32 %v202, %v945
    %v1293 = vadd.f32 %v203, %v947
    %v1294 = vadd.f32 %v204, %v1138
    %v1295 = vadd.f32 %v205, %v1140
    %v1296 = vadd.f32 %v206, %v949
    %v1297 = vadd.f32 %v207, %v951
    %v1298 = vadd.f32 %v208, %v1142
    %v1299 = vadd.f32 %v209, %v1144
    %v1300 = vadd.f32 %v210, %v955
    %v1301 = vadd.f32 %v211, %v957
    %v1302 = vadd.f32 %v212, %v1148
    %v1303 = vadd.f32 %v213, %v1150
    %v1304 = vadd.f32 %v214, %v959
    %v1305 = vadd.f32 %v215, %v961
    %v1306 = vadd.f32 %v216, %v1152
    %v1307 = vadd.f32 %v217, %v1154
    %v1308 = vadd.f32 %v218, %v965
    %v1309 = vadd.f32 %v219, %v967
    %v1310 = vadd.f32 %v220, %v1158
    %v1311 = vadd.f32 %v221, %v1160
    %v1312 = vadd.f32 %v222, %v969
    %v1313 = vadd.f32 %v223, %v971
    %v1314 = vadd.f32 %v224, %v1162
    %v1315 = vadd.f32 %v225, %v1164
    %v1316 = vadd.f32 %v226, %v975
    %v1317 = vadd.f32 %v227, %v977
    %v1318 = vadd.f32 %v228, %v1168
    %v1319 = vadd.f32 %v229, %v1170
    %v1320 = vadd.f32 %v230, %v979
    %v1321 = vadd.f32 %v231, %v981
    %v1322 = vadd.f32 %v232, %v1172
    %v1323 = vadd.f32 %v233, %v1174
    %v1324 = vadd.f32 %v234, %v985
    %v1325 = vadd.f32 %v235, %v987
    %v1326 = vadd.f32 %v236, %v1178
    %v1327 = vadd.f32 %v237, %v1180
    %v1328 = vadd.f32 %v238, %v989
    %v1329 = vadd.f32 %v239, %v991
    %v1330 = vadd.f32 %v240, %v1182
    %v1331 = vadd.f32 %v241, %v1184
    %v1332 = vadd.f32 %v242, %v995
    %v1333 = vadd.f32 %v243, %v997
    %v1334 = vadd.f32 %v244, %v1188
    %v1335 = vadd.f32 %v245, %v1190
    %v1336 = vadd.f32 %v246, %v999
    %v1337 = vadd.f32 %v247, %v1001
    %v1338 = vadd.f32 %v248, %v1192
    %v1339 = vadd.f32 %v249, %v1194
    %v1340 = vadd.f32 %v250, %v1005
    %v1341 = vadd.f32 %v251, %v1007
    %v1342 = vadd.f32 %v252, %v1198
    %v1343 = vadd.f32 %v253, %v1200
    %v1344 = vadd.f32 %v254, %v1009
    %v1345 = vadd.f32 %v255, %v1011
    %v1346 = vadd.f32 %v256, %v1202
    %v1347 = vadd.f32 %v257, %v1204
    %v1348 = vadd.f32 %v258, %v1015
    %v1349 = vadd.f32 %v259, %v1017
    %v1350 = vadd.f32 %v260, %v1208
    %v1351 = vadd.f32 %v261, %v1210
    %v1352 = vadd.f32 %v262, %v1019
    %v1353 = vadd.f32 %v263, %v1021
    %v1354 = vadd.f32 %v264, %v1212
    %v1355 = vadd.f32 %v265, %v1214
    %v1356 = vadd.f32 %v266, %v1025
    %v1357 = vadd.f32 %v267, %v1027
    %v1358 = vadd.f32 %v268, %v1218
    %v1359 = vadd.f32 %v269, %v1220
    %v1360 = vadd.f32 %v270, %v1029
    %v1361 = vadd.f32 %v271, %v1031
    %v1362 = vadd.f32 %v272, %v1222
    %v1363 = vadd.f32 %v273, %v1224
    %v1364 = vadd.f32 %v274, %v1035
    %v1365 = vadd.f32 %v275, %v1037
    %v1366 = vadd.f32 %v276, %v1228
    %v1367 = vadd.f32 %v277, %v1230
    %v1368 = vadd.f32 %v278, %v1039
    %v1369 = vadd.f32 %v279, %v1041
    %v1370 = vadd.f32 %v280, %v1232
    %v1371 = vadd.f32 %v281, %v1234
    %v1372 = vadd.f32 %v282, %v1045
    %v1373 = vadd.f32 %v283, %v1047
    %v1374 = vadd.f32 %v284, %v1238
    %v1375 = vadd.f32 %v285, %v1240
    %v1376 = vadd.f32 %v286, %v1049
    %v1377 = vadd.f32 %v287, %v1051
    %v1378 = vadd.f32 %v288, %v1242
    %v1379 = vadd.f32 %v289, %v1244
    %v1380 = vadd.f32 %v290, %v1055
    %v1381 = vadd.f32 %v291, %v1057
    %v1382 = vadd.f32 %v292, %v1248
    %v1383 = vadd.f32 %v293, %v1250
    %v1384 = vadd.f32 %v294, %v1059
    %v1385 = vadd.f32 %v295, %v1061
    %v1386 = vadd.f32 %v296, %v1252
    %v1387 = vadd.f32 %v297, %v1254
    %v1388 = vadd.f32 %v298, %v1065
    %v1389 = vadd.f32 %v299, %v1067
    %v1390 = vadd.f32 %v300, %v1258
    %v1391 = vadd.f32 %v301, %v1260
    %v1392 = vadd.f32 %v302, %v1069
    %v1393 = vadd.f32 %v303, %v1071
    %v1394 = vadd.f32 %v304, %v1262
    %v1395 = vadd.f32 %v305, %v1264
    %v1396 = vadd.f32 %v306, %v1075
    %v1397 = vadd.f32 %v307, %v1077
    %v1398 = vadd.f32 %v308, %v1268
    %v1399 = vadd.f32 %v309, %v1270
    %v1400 = vadd.f32 %v310, %v1079
    %v1401 = vadd.f32 %v311, %v1081
    %v1402 = vadd.f32 %v312, %v1272
    %v1403 = vadd.f32 %v313, %v1274
    %1404 = vst [vmem:[#allocation2] sm:$0xff] %v1276
    %1405 = vst [vmem:[#allocation2 + $0x8] sm:$0xff] %v1277
    %1406 = vst [vmem:[#allocation2 + $0x10] sm:$0xff] %v1278
    %1407 = vst [vmem:[#allocation2 + $0x18] sm:$0xff] %v1279
    %1408 = vst [vmem:[#allocation2 + $0x20] sm:$0xff] %v1280
    %1409 = vst [vmem:[#allocation2 + $0x28] sm:$0xff] %v1281
    %1410 = vst [vmem:[#allocation2 + $0x30] sm:$0xff] %v1282
    %1411 = vst [vmem:[#allocation2 + $0x38] sm:$0xff] %v1283
    %1412 = vst [vmem:[#allocation2 + $0x40] sm:$0xff] %v1284
    %1413 = vst [vmem:[#allocation2 + $0x48] sm:$0xff] %v1285
    %1414 = vst [vmem:[#allocation2 + $0x50] sm:$0xff] %v1286
    %1415 = vst [vmem:[#allocation2 + $0x58] sm:$0xff] %v1287
    %1416 = vst [vmem:[#allocation2 + $0x60] sm:$0xff] %v1288
    %1417 = vst [vmem:[#allocation2 + $0x68] sm:$0xff] %v1289
    %1418 = vst [vmem:[#allocation2 + $0x70] sm:$0xff] %v1290
    %1419 = vst [vmem:[#allocation2 + $0x78] sm:$0xff] %v1291
    %1420 = vst [vmem:[#allocation2 + $0x80] sm:$0xff] %v1292
    %1421 = vst [vmem:[#allocation2 + $0x88] sm:$0xff] %v1293
    %1422 = vst [vmem:[#allocation2 + $0x90] sm:$0xff] %v1294
    %1423 = vst [vmem:[#allocation2 + $0x98] sm:$0xff] %v1295
    %1424 = vst [vmem:[#allocation2 + $0xa0] sm:$0xff] %v1296
    %1425 = vst [vmem:[#allocation2 + $0xa8] sm:$0xff] %v1297
    %1426 = vst [vmem:[#allocation2 + $0xb0] sm:$0xff] %v1298
    %1427 = vst [vmem:[#allocation2 + $0xb8] sm:$0xff] %v1299
    %1428 = vst [vmem:[#allocation2 + $0xc0] sm:$0xff] %v1300
    %1429 = vst [vmem:[#allocation2 + $0xc8] sm:$0xff] %v1301
    %1430 = vst [vmem:[#allocation2 + $0xd0] sm:$0xff] %v1302
    %1431 = vst [vmem:[#allocation2 + $0xd8] sm:$0xff] %v1303
    %1432 = vst [vmem:[#allocation2 + $0xe0] sm:$0xff] %v1304
    %1433 = vst [vmem:[#allocation2 + $0xe8] sm:$0xff] %v1305
    %1434 = vst [vmem:[#allocation2 + $0xf0] sm:$0xff] %v1306
    %1435 = vst [vmem:[#allocation2 + $0xf8] sm:$0xff] %v1307
    %1436 = vst [vmem:[#allocation2 + $0x100] sm:$0xff] %v1308
    %1437 = vst [vmem:[#allocation2 + $0x108] sm:$0xff] %v1309
    %1438 = vst [vmem:[#allocation2 + $0x110] sm:$0xff] %v1310
    %1439 = vst [vmem:[#allocation2 + $0x118] sm:$0xff] %v1311
    %1440 = vst [vmem:[#allocation2 + $0x120] sm:$0xff] %v1312
    %1441 = vst [vmem:[#allocation2 + $0x128] sm:$0xff] %v1313
    %1442 = vst [vmem:[#allocation2 + $0x130] sm:$0xff] %v1314
    %1443 = vst [vmem:[#allocation2 + $0x138] sm:$0xff] %v1315
    %1444 = vst [vmem:[#allocation2 + $0x140] sm:$0xff] %v1316
    %1445 = vst [vmem:[#allocation2 + $0x148] sm:$0xff] %v1317
    %1446 = vst [vmem:[#allocation2 + $0x150] sm:$0xff] %v1318
    %1447 = vst [vmem:[#allocation2 + $0x158] sm:$0xff] %v1319
    %1448 = vst [vmem:[#allocation2 + $0x160] sm:$0xff] %v1320
    %1449 = vst [vmem:[#allocation2 + $0x168] sm:$0xff] %v1321
    %1450 = vst [vmem:[#allocation2 + $0x170] sm:$0xff] %v1322
    %1451 = vst [vmem:[#allocation2 + $0x178] sm:$0xff] %v1323
    %1452 = vst [vmem:[#allocation2 + $0x180] sm:$0xff] %v1324
    %1453 = vst [vmem:[#allocation2 + $0x188] sm:$0xff] %v1325
    %1454 = vst [vmem:[#allocation2 + $0x190] sm:$0xff] %v1326
    %1455 = vst [vmem:[#allocation2 + $0x198] sm:$0xff] %v1327
    %1456 = vst [vmem:[#allocation2 + $0x1a0] sm:$0xff] %v1328
    %1457 = vst [vmem:[#allocation2 + $0x1a8] sm:$0xff] %v1329
    %1458 = vst [vmem:[#allocation2 + $0x1b0] sm:$0xff] %v1330
    %1459 = vst [vmem:[#allocation2 + $0x1b8] sm:$0xff] %v1331
    %1460 = vst [vmem:[#allocation2 + $0x1c0] sm:$0xff] %v1332
    %1461 = vst [vmem:[#allocation2 + $0x1c8] sm:$0xff] %v1333
    %1462 = vst [vmem:[#allocation2 + $0x1d0] sm:$0xff] %v1334
    %1463 = vst [vmem:[#allocation2 + $0x1d8] sm:$0xff] %v1335
    %1464 = vst [vmem:[#allocation2 + $0x1e0] sm:$0xff] %v1336
    %1465 = vst [vmem:[#allocation2 + $0x1e8] sm:$0xff] %v1337
    %1466 = vst [vmem:[#allocation2 + $0x1f0] sm:$0xff] %v1338
    %1467 = vst [vmem:[#allocation2 + $0x1f8] sm:$0xff] %v1339
    %1468 = vst [vmem:[#allocation2 + $0x200] sm:$0xff] %v1340
    %1469 = vst [vmem:[#allocation2 + $0x208] sm:$0xff] %v1341
    %1470 = vst [vmem:[#allocation2 + $0x210] sm:$0xff] %v1342
    %1471 = vst [vmem:[#allocation2 + $0x218] sm:$0xff] %v1343
    %1472 = vst [vmem:[#allocation2 + $0x220] sm:$0xff] %v1344
    %1473 = vst [vmem:[#allocation2 + $0x228] sm:$0xff] %v1345
    %1474 = vst [vmem:[#allocation2 + $0x230] sm:$0xff] %v1346
    %1475 = vst [vmem:[#allocation2 + $0x238] sm:$0xff] %v1347
    %1476 = vst [vmem:[#allocation2 + $0x240] sm:$0xff] %v1348
    %1477 = vst [vmem:[#allocation2 + $0x248] sm:$0xff] %v1349
    %1478 = vst [vmem:[#allocation2 + $0x250] sm:$0xff] %v1350
    %1479 = vst [vmem:[#allocation2 + $0x258] sm:$0xff] %v1351
    %1480 = vst [vmem:[#allocation2 + $0x260] sm:$0xff] %v1352
    %1481 = vst [vmem:[#allocation2 + $0x268] sm:$0xff] %v1353
    %1482 = vst [vmem:[#allocation2 + $0x270] sm:$0xff] %v1354
    %1483 = vst [vmem:[#allocation2 + $0x278] sm:$0xff] %v1355
    %1484 = vst [vmem:[#allocation2 + $0x280] sm:$0xff] %v1356
    %1485 = vst [vmem:[#allocation2 + $0x288] sm:$0xff] %v1357
    %1486 = vst [vmem:[#allocation2 + $0x290] sm:$0xff] %v1358
    %1487 = vst [vmem:[#allocation2 + $0x298] sm:$0xff] %v1359
    %1488 = vst [vmem:[#allocation2 + $0x2a0] sm:$0xff] %v1360
    %1489 = vst [vmem:[#allocation2 + $0x2a8] sm:$0xff] %v1361
    %1490 = vst [vmem:[#allocation2 + $0x2b0] sm:$0xff] %v1362
    %1491 = vst [vmem:[#allocation2 + $0x2b8] sm:$0xff] %v1363
    %1492 = vst [vmem:[#allocation2 + $0x2c0] sm:$0xff] %v1364
    %1493 = vst [vmem:[#allocation2 + $0x2c8] sm:$0xff] %v1365
    %1494 = vst [vmem:[#allocation2 + $0x2d0] sm:$0xff] %v1366
    %1495 = vst [vmem:[#allocation2 + $0x2d8] sm:$0xff] %v1367
    %1496 = vst [vmem:[#allocation2 + $0x2e0] sm:$0xff] %v1368
    %1497 = vst [vmem:[#allocation2 + $0x2e8] sm:$0xff] %v1369
    %1498 = vst [vmem:[#allocation2 + $0x2f0] sm:$0xff] %v1370
    %1499 = vst [vmem:[#allocation2 + $0x2f8] sm:$0xff] %v1371
    %1500 = vst [vmem:[#allocation2 + $0x300] sm:$0xff] %v1372
    %1501 = vst [vmem:[#allocation2 + $0x308] sm:$0xff] %v1373
    %1502 = vst [vmem:[#allocation2 + $0x310] sm:$0xff] %v1374
    %1503 = vst [vmem:[#allocation2 + $0x318] sm:$0xff] %v1375
    %1504 = vst [vmem:[#allocation2 + $0x320] sm:$0xff] %v1376
    %1505 = vst [vmem:[#allocation2 + $0x328] sm:$0xff] %v1377
    %1506 = vst [vmem:[#allocation2 + $0x330] sm:$0xff] %v1378
    %1507 = vst [vmem:[#allocation2 + $0x338] sm:$0xff] %v1379
    %1508 = vst [vmem:[#allocation2 + $0x340] sm:$0xff] %v1380
    %1509 = vst [vmem:[#allocation2 + $0x348] sm:$0xff] %v1381
    %1510 = vst [vmem:[#allocation2 + $0x350] sm:$0xff] %v1382
    %1511 = vst [vmem:[#allocation2 + $0x358] sm:$0xff] %v1383
    %1512 = vst [vmem:[#allocation2 + $0x360] sm:$0xff] %v1384
    %1513 = vst [vmem:[#allocation2 + $0x368] sm:$0xff] %v1385
    %1514 = vst [vmem:[#allocation2 + $0x370] sm:$0xff] %v1386
    %1515 = vst [vmem:[#allocation2 + $0x378] sm:$0xff] %v1387
    %1516 = vst [vmem:[#allocation2 + $0x380] sm:$0xff] %v1388
    %1517 = vst [vmem:[#allocation2 + $0x388] sm:$0xff] %v1389
    %1518 = vst [vmem:[#allocation2 + $0x390] sm:$0xff] %v1390
    %1519 = vst [vmem:[#allocation2 + $0x398] sm:$0xff] %v1391
    %1520 = vst [vmem:[#allocation2 + $0x3a0] sm:$0xff] %v1392
    %1521 = vst [vmem:[#allocation2 + $0x3a8] sm:$0xff] %v1393
    %1522 = vst [vmem:[#allocation2 + $0x3b0] sm:$0xff] %v1394
    %1523 = vst [vmem:[#allocation2 + $0x3b8] sm:$0xff] %v1395
    %1524 = vst [vmem:[#allocation2 + $0x3c0] sm:$0xff] %v1396
    %1525 = vst [vmem:[#allocation2 + $0x3c8] sm:$0xff] %v1397
    %1526 = vst [vmem:[#allocation2 + $0x3d0] sm:$0xff] %v1398
    %1527 = vst [vmem:[#allocation2 + $0x3d8] sm:$0xff] %v1399
    %1528 = vst [vmem:[#allocation2 + $0x3e0] sm:$0xff] %v1400
    %1529 = vst [vmem:[#allocation2 + $0x3e8] sm:$0xff] %v1401
    %1530 = vst [vmem:[#allocation2 + $0x3f0] sm:$0xff] %v1402
    %1531 = vst [vmem:[#allocation2 + $0x3f8] sm:$0xff] %v1403
    // Predicated region
    $region30: #{tpu_custom_call.1} parent=1 // pred_check
      %p1532 = pneg %p54
    $region31: #{tpu_custom_call.1} parent=1 // pred_check_branch
      %1534 = sbr.rel (%p1532) target = $region33
    $region32: #{tpu_custom_call.1} parent=1 // pred_region
      %v1535 = vld [vmem:[#allocation2] sm:$0xff]
      %v1536 = vld [vmem:[#allocation2 + $0x8] sm:$0xff]
      %v1537 = vld [vmem:[#allocation2 + $0x10] sm:$0xff]
      %v1538 = vld [vmem:[#allocation2 + $0x18] sm:$0xff]
      %v1539 = vld [vmem:[#allocation2 + $0x20] sm:$0xff]
      %v1540 = vld [vmem:[#allocation2 + $0x28] sm:$0xff]
      %v1541 = vld [vmem:[#allocation2 + $0x30] sm:$0xff]
      %v1542 = vld [vmem:[#allocation2 + $0x38] sm:$0xff]
      %v1543 = vld [vmem:[#allocation2 + $0x40] sm:$0xff]
      %v1544 = vld [vmem:[#allocation2 + $0x48] sm:$0xff]
      %v1545 = vld [vmem:[#allocation2 + $0x50] sm:$0xff]
      %v1546 = vld [vmem:[#allocation2 + $0x58] sm:$0xff]
      %v1547 = vld [vmem:[#allocation2 + $0x60] sm:$0xff]
      %v1548 = vld [vmem:[#allocation2 + $0x68] sm:$0xff]
      %v1549 = vld [vmem:[#allocation2 + $0x70] sm:$0xff]
      %v1550 = vld [vmem:[#allocation2 + $0x78] sm:$0xff]
      %v1551 = vld [vmem:[#allocation2 + $0x80] sm:$0xff]
      %v1552 = vld [vmem:[#allocation2 + $0x88] sm:$0xff]
      %v1553 = vld [vmem:[#allocation2 + $0x90] sm:$0xff]
      %v1554 = vld [vmem:[#allocation2 + $0x98] sm:$0xff]
      %v1555 = vld [vmem:[#allocation2 + $0xa0] sm:$0xff]
      %v1556 = vld [vmem:[#allocation2 + $0xa8] sm:$0xff]
      %v1557 = vld [vmem:[#allocation2 + $0xb0] sm:$0xff]
      %v1558 = vld [vmem:[#allocation2 + $0xb8] sm:$0xff]
      %v1559 = vld [vmem:[#allocation2 + $0xc0] sm:$0xff]
      %v1560 = vld [vmem:[#allocation2 + $0xc8] sm:$0xff]
      %v1561 = vld [vmem:[#allocation2 + $0xd0] sm:$0xff]
      %v1562 = vld [vmem:[#allocation2 + $0xd8] sm:$0xff]
      %v1563 = vld [vmem:[#allocation2 + $0xe0] sm:$0xff]
      %v1564 = vld [vmem:[#allocation2 + $0xe8] sm:$0xff]
      %v1565 = vld [vmem:[#allocation2 + $0xf0] sm:$0xff]
      %v1566 = vld [vmem:[#allocation2 + $0xf8] sm:$0xff]
      %v1567 = vld [vmem:[#allocation2 + $0x100] sm:$0xff]
      %v1568 = vld [vmem:[#allocation2 + $0x108] sm:$0xff]
      %v1569 = vld [vmem:[#allocation2 + $0x110] sm:$0xff]
      %v1570 = vld [vmem:[#allocation2 + $0x118] sm:$0xff]
      %v1571 = vld [vmem:[#allocation2 + $0x120] sm:$0xff]
      %v1572 = vld [vmem:[#allocation2 + $0x128] sm:$0xff]
      %v1573 = vld [vmem:[#allocation2 + $0x130] sm:$0xff]
      %v1574 = vld [vmem:[#allocation2 + $0x138] sm:$0xff]
      %v1575 = vld [vmem:[#allocation2 + $0x140] sm:$0xff]
      %v1576 = vld [vmem:[#allocation2 + $0x148] sm:$0xff]
      %v1577 = vld [vmem:[#allocation2 + $0x150] sm:$0xff]
      %v1578 = vld [vmem:[#allocation2 + $0x158] sm:$0xff]
      %v1579 = vld [vmem:[#allocation2 + $0x160] sm:$0xff]
      %v1580 = vld [vmem:[#allocation2 + $0x168] sm:$0xff]
      %v1581 = vld [vmem:[#allocation2 + $0x170] sm:$0xff]
      %v1582 = vld [vmem:[#allocation2 + $0x178] sm:$0xff]
      %v1583 = vld [vmem:[#allocation2 + $0x180] sm:$0xff]
      %v1584 = vld [vmem:[#allocation2 + $0x188] sm:$0xff]
      %v1585 = vld [vmem:[#allocation2 + $0x190] sm:$0xff]
      %v1586 = vld [vmem:[#allocation2 + $0x198] sm:$0xff]
      %v1587 = vld [vmem:[#allocation2 + $0x1a0] sm:$0xff]
      %v1588 = vld [vmem:[#allocation2 + $0x1a8] sm:$0xff]
      %v1589 = vld [vmem:[#allocation2 + $0x1b0] sm:$0xff]
      %v1590 = vld [vmem:[#allocation2 + $0x1b8] sm:$0xff]
      %v1591 = vld [vmem:[#allocation2 + $0x1c0] sm:$0xff]
      %v1592 = vld [vmem:[#allocation2 + $0x1c8] sm:$0xff]
      %v1593 = vld [vmem:[#allocation2 + $0x1d0] sm:$0xff]
      %v1594 = vld [vmem:[#allocation2 + $0x1d8] sm:$0xff]
      %v1595 = vld [vmem:[#allocation2 + $0x1e0] sm:$0xff]
      %v1596 = vld [vmem:[#allocation2 + $0x1e8] sm:$0xff]
      %v1597 = vld [vmem:[#allocation2 + $0x1f0] sm:$0xff]
      %v1598 = vld [vmem:[#allocation2 + $0x1f8] sm:$0xff]
      %v1599 = vld [vmem:[#allocation2 + $0x200] sm:$0xff]
      %v1600 = vld [vmem:[#allocation2 + $0x208] sm:$0xff]
      %v1601 = vld [vmem:[#allocation2 + $0x210] sm:$0xff]
      %v1602 = vld [vmem:[#allocation2 + $0x218] sm:$0xff]
      %v1603 = vld [vmem:[#allocation2 + $0x220] sm:$0xff]
      %v1604 = vld [vmem:[#allocation2 + $0x228] sm:$0xff]
      %v1605 = vld [vmem:[#allocation2 + $0x230] sm:$0xff]
      %v1606 = vld [vmem:[#allocation2 + $0x238] sm:$0xff]
      %v1607 = vld [vmem:[#allocation2 + $0x240] sm:$0xff]
      %v1608 = vld [vmem:[#allocation2 + $0x248] sm:$0xff]
      %v1609 = vld [vmem:[#allocation2 + $0x250] sm:$0xff]
      %v1610 = vld [vmem:[#allocation2 + $0x258] sm:$0xff]
      %v1611 = vld [vmem:[#allocation2 + $0x260] sm:$0xff]
      %v1612 = vld [vmem:[#allocation2 + $0x268] sm:$0xff]
      %v1613 = vld [vmem:[#allocation2 + $0x270] sm:$0xff]
      %v1614 = vld [vmem:[#allocation2 + $0x278] sm:$0xff]
      %v1615 = vld [vmem:[#allocation2 + $0x280] sm:$0xff]
      %v1616 = vld [vmem:[#allocation2 + $0x288] sm:$0xff]
      %v1617 = vld [vmem:[#allocation2 + $0x290] sm:$0xff]
      %v1618 = vld [vmem:[#allocation2 + $0x298] sm:$0xff]
      %v1619 = vld [vmem:[#allocation2 + $0x2a0] sm:$0xff]
      %v1620 = vld [vmem:[#allocation2 + $0x2a8] sm:$0xff]
      %v1621 = vld [vmem:[#allocation2 + $0x2b0] sm:$0xff]
      %v1622 = vld [vmem:[#allocation2 + $0x2b8] sm:$0xff]
      %v1623 = vld [vmem:[#allocation2 + $0x2c0] sm:$0xff]
      %v1624 = vld [vmem:[#allocation2 + $0x2c8] sm:$0xff]
      %v1625 = vld [vmem:[#allocation2 + $0x2d0] sm:$0xff]
      %v1626 = vld [vmem:[#allocation2 + $0x2d8] sm:$0xff]
      %v1627 = vld [vmem:[#allocation2 + $0x2e0] sm:$0xff]
      %v1628 = vld [vmem:[#allocation2 + $0x2e8] sm:$0xff]
      %v1629 = vld [vmem:[#allocation2 + $0x2f0] sm:$0xff]
      %v1630 = vld [vmem:[#allocation2 + $0x2f8] sm:$0xff]
      %v1631 = vld [vmem:[#allocation2 + $0x300] sm:$0xff]
      %v1632 = vld [vmem:[#allocation2 + $0x308] sm:$0xff]
      %v1633 = vld [vmem:[#allocation2 + $0x310] sm:$0xff]
      %v1634 = vld [vmem:[#allocation2 + $0x318] sm:$0xff]
      %v1635 = vld [vmem:[#allocation2 + $0x320] sm:$0xff]
      %v1636 = vld [vmem:[#allocation2 + $0x328] sm:$0xff]
      %v1637 = vld [vmem:[#allocation2 + $0x330] sm:$0xff]
      %v1638 = vld [vmem:[#allocation2 + $0x338] sm:$0xff]
      %v1639 = vld [vmem:[#allocation2 + $0x340] sm:$0xff]
      %v1640 = vld [vmem:[#allocation2 + $0x348] sm:$0xff]
      %v1641 = vld [vmem:[#allocation2 + $0x350] sm:$0xff]
      %v1642 = vld [vmem:[#allocation2 + $0x358] sm:$0xff]
      %v1643 = vld [vmem:[#allocation2 + $0x360] sm:$0xff]
      %v1644 = vld [vmem:[#allocation2 + $0x368] sm:$0xff]
      %v1645 = vld [vmem:[#allocation2 + $0x370] sm:$0xff]
      %v1646 = vld [vmem:[#allocation2 + $0x378] sm:$0xff]
      %v1647 = vld [vmem:[#allocation2 + $0x380] sm:$0xff]
      %v1648 = vld [vmem:[#allocation2 + $0x388] sm:$0xff]
      %v1649 = vld [vmem:[#allocation2 + $0x390] sm:$0xff]
      %v1650 = vld [vmem:[#allocation2 + $0x398] sm:$0xff]
      %v1651 = vld [vmem:[#allocation2 + $0x3a0] sm:$0xff]
      %v1652 = vld [vmem:[#allocation2 + $0x3a8] sm:$0xff]
      %v1653 = vld [vmem:[#allocation2 + $0x3b0] sm:$0xff]
      %v1654 = vld [vmem:[#allocation2 + $0x3b8] sm:$0xff]
      %v1655 = vld [vmem:[#allocation2 + $0x3c0] sm:$0xff]
      %v1656 = vld [vmem:[#allocation2 + $0x3c8] sm:$0xff]
      %v1657 = vld [vmem:[#allocation2 + $0x3d0] sm:$0xff]
      %v1658 = vld [vmem:[#allocation2 + $0x3d8] sm:$0xff]
      %v1659 = vld [vmem:[#allocation2 + $0x3e0] sm:$0xff]
      %v1660 = vld [vmem:[#allocation2 + $0x3e8] sm:$0xff]
      %v1661 = vld [vmem:[#allocation2 + $0x3f0] sm:$0xff]
      %v1662 = vld [vmem:[#allocation2 + $0x3f8] sm:$0xff]
      %v1663 = vld [vmem:[#allocation8] sm:$0xf]
      %v1665 = vlaneseq
      %v1666 = vshrl.u32 %v1665, 7
      %v1667 = vsub.s32 0, %v1666
      %v1668 = vrot.slane %v1663, %v1667
      %v1669 = vlaneseq
      %v1670 = vshrl.u32 %v1669, 7
      %v1671 = vsub.s32 1, %v1670
      %v1672 = vrot.slane %v1663, %v1671
      %v1673 = vlaneseq
      %v1674 = vshrl.u32 %v1673, 7
      %v1675 = vsub.s32 2, %v1674
      %v1676 = vrot.slane %v1663, %v1675
      %v1677 = vlaneseq
      %v1678 = vshrl.u32 %v1677, 7
      %v1679 = vsub.s32 3, %v1678
      %v1680 = vrot.slane %v1663, %v1679
      %v1685 = vadd.f32 %v1535, %v1668
      %v1686 = vadd.f32 %v1536, %v1672
      %v1687 = vadd.f32 %v1537, %v1676
      %v1688 = vadd.f32 %v1538, %v1680
      %v1689 = vadd.f32 %v1539, %v1668
      %v1690 = vadd.f32 %v1540, %v1672
      %v1691 = vadd.f32 %v1541, %v1676
      %v1692 = vadd.f32 %v1542, %v1680
      %v1693 = vadd.f32 %v1543, %v1668
      %v1694 = vadd.f32 %v1544, %v1672
      %v1695 = vadd.f32 %v1545, %v1676
      %v1696 = vadd.f32 %v1546, %v1680
      %v1697 = vadd.f32 %v1547, %v1668
      %v1698 = vadd.f32 %v1548, %v1672
      %v1699 = vadd.f32 %v1549, %v1676
      %v1700 = vadd.f32 %v1550, %v1680
      %v1701 = vadd.f32 %v1551, %v1668
      %v1702 = vadd.f32 %v1552, %v1672
      %v1703 = vadd.f32 %v1553, %v1676
      %v1704 = vadd.f32 %v1554, %v1680
      %v1705 = vadd.f32 %v1555, %v1668
      %v1706 = vadd.f32 %v1556, %v1672
      %v1707 = vadd.f32 %v1557, %v1676
      %v1708 = vadd.f32 %v1558, %v1680
      %v1709 = vadd.f32 %v1559, %v1668
      %v1710 = vadd.f32 %v1560, %v1672
      %v1711 = vadd.f32 %v1561, %v1676
      %v1712 = vadd.f32 %v1562, %v1680
      %v1713 = vadd.f32 %v1563, %v1668
      %v1714 = vadd.f32 %v1564, %v1672
      %v1715 = vadd.f32 %v1565, %v1676
      %v1716 = vadd.f32 %v1566, %v1680
      %v1717 = vadd.f32 %v1567, %v1668
      %v1718 = vadd.f32 %v1568, %v1672
      %v1719 = vadd.f32 %v1569, %v1676
      %v1720 = vadd.f32 %v1570, %v1680
      %v1721 = vadd.f32 %v1571, %v1668
      %v1722 = vadd.f32 %v1572, %v1672
      %v1723 = vadd.f32 %v1573, %v1676
      %v1724 = vadd.f32 %v1574, %v1680
      %v1725 = vadd.f32 %v1575, %v1668
      %v1726 = vadd.f32 %v1576, %v1672
      %v1727 = vadd.f32 %v1577, %v1676
      %v1728 = vadd.f32 %v1578, %v1680
      %v1729 = vadd.f32 %v1579, %v1668
      %v1730 = vadd.f32 %v1580, %v1672
      %v1731 = vadd.f32 %v1581, %v1676
      %v1732 = vadd.f32 %v1582, %v1680
      %v1733 = vadd.f32 %v1583, %v1668
      %v1734 = vadd.f32 %v1584, %v1672
      %v1735 = vadd.f32 %v1585, %v1676
      %v1736 = vadd.f32 %v1586, %v1680
      %v1737 = vadd.f32 %v1587, %v1668
      %v1738 = vadd.f32 %v1588, %v1672
      %v1739 = vadd.f32 %v1589, %v1676
      %v1740 = vadd.f32 %v1590, %v1680
      %v1741 = vadd.f32 %v1591, %v1668
      %v1742 = vadd.f32 %v1592, %v1672
      %v1743 = vadd.f32 %v1593, %v1676
      %v1744 = vadd.f32 %v1594, %v1680
      %v1745 = vadd.f32 %v1595, %v1668
      %v1746 = vadd.f32 %v1596, %v1672
      %v1747 = vadd.f32 %v1597, %v1676
      %v1748 = vadd.f32 %v1598, %v1680
      %v1749 = vadd.f32 %v1599, %v1668
      %v1750 = vadd.f32 %v1600, %v1672
      %v1751 = vadd.f32 %v1601, %v1676
      %v1752 = vadd.f32 %v1602, %v1680
      %v1753 = vadd.f32 %v1603, %v1668
      %v1754 = vadd.f32 %v1604, %v1672
      %v1755 = vadd.f32 %v1605, %v1676
      %v1756 = vadd.f32 %v1606, %v1680
      %v1757 = vadd.f32 %v1607, %v1668
      %v1758 = vadd.f32 %v1608, %v1672
      %v1759 = vadd.f32 %v1609, %v1676
      %v1760 = vadd.f32 %v1610, %v1680
      %v1761 = vadd.f32 %v1611, %v1668
      %v1762 = vadd.f32 %v1612, %v1672
      %v1763 = vadd.f32 %v1613, %v1676
      %v1764 = vadd.f32 %v1614, %v1680
      %v1765 = vadd.f32 %v1615, %v1668
      %v1766 = vadd.f32 %v1616, %v1672
      %v1767 = vadd.f32 %v1617, %v1676
      %v1768 = vadd.f32 %v1618, %v1680
      %v1769 = vadd.f32 %v1619, %v1668
      %v1770 = vadd.f32 %v1620, %v1672
      %v1771 = vadd.f32 %v1621, %v1676
      %v1772 = vadd.f32 %v1622, %v1680
      %v1773 = vadd.f32 %v1623, %v1668
      %v1774 = vadd.f32 %v1624, %v1672
      %v1775 = vadd.f32 %v1625, %v1676
      %v1776 = vadd.f32 %v1626, %v1680
      %v1777 = vadd.f32 %v1627, %v1668
      %v1778 = vadd.f32 %v1628, %v1672
      %v1779 = vadd.f32 %v1629, %v1676
      %v1780 = vadd.f32 %v1630, %v1680
      %v1781 = vadd.f32 %v1631, %v1668
      %v1782 = vadd.f32 %v1632, %v1672
      %v1783 = vadd.f32 %v1633, %v1676
      %v1784 = vadd.f32 %v1634, %v1680
      %v1785 = vadd.f32 %v1635, %v1668
      %v1786 = vadd.f32 %v1636, %v1672
      %v1787 = vadd.f32 %v1637, %v1676
      %v1788 = vadd.f32 %v1638, %v1680
      %v1789 = vadd.f32 %v1639, %v1668
      %v1790 = vadd.f32 %v1640, %v1672
      %v1791 = vadd.f32 %v1641, %v1676
      %v1792 = vadd.f32 %v1642, %v1680
      %v1793 = vadd.f32 %v1643, %v1668
      %v1794 = vadd.f32 %v1644, %v1672
      %v1795 = vadd.f32 %v1645, %v1676
      %v1796 = vadd.f32 %v1646, %v1680
      %v1797 = vadd.f32 %v1647, %v1668
      %v1798 = vadd.f32 %v1648, %v1672
      %v1799 = vadd.f32 %v1649, %v1676
      %v1800 = vadd.f32 %v1650, %v1680
      %v1801 = vadd.f32 %v1651, %v1668
      %v1802 = vadd.f32 %v1652, %v1672
      %v1803 = vadd.f32 %v1653, %v1676
      %v1804 = vadd.f32 %v1654, %v1680
      %v1805 = vadd.f32 %v1655, %v1668
      %v1806 = vadd.f32 %v1656, %v1672
      %v1807 = vadd.f32 %v1657, %v1676
      %v1808 = vadd.f32 %v1658, %v1680
      %v1809 = vadd.f32 %v1659, %v1668
      %v1810 = vadd.f32 %v1660, %v1672
      %v1811 = vadd.f32 %v1661, %v1676
      %v1812 = vadd.f32 %v1662, %v1680
      %v1813 = vpack.c.bf16 %v1689, %v1685
      %v1814 = vpack.c.bf16 %v1690, %v1686
      %v1815 = vpack.c.bf16 %v1691, %v1687
      %v1816 = vpack.c.bf16 %v1692, %v1688
      %v1817 = vpack.c.bf16 %v1697, %v1693
      %v1818 = vpack.c.bf16 %v1698, %v1694
      %v1819 = vpack.c.bf16 %v1699, %v1695
      %v1820 = vpack.c.bf16 %v1700, %v1696
      %v1821 = vpack.c.bf16 %v1705, %v1701
      %v1822 = vpack.c.bf16 %v1706, %v1702
      %v1823 = vpack.c.bf16 %v1707, %v1703
      %v1824 = vpack.c.bf16 %v1708, %v1704
      %v1825 = vpack.c.bf16 %v1713, %v1709
      %v1826 = vpack.c.bf16 %v1714, %v1710
      %v1827 = vpack.c.bf16 %v1715, %v1711
      %v1828 = vpack.c.bf16 %v1716, %v1712
      %v1829 = vpack.c.bf16 %v1721, %v1717
      %v1830 = vpack.c.bf16 %v1722, %v1718
      %v1831 = vpack.c.bf16 %v1723, %v1719
      %v1832 = vpack.c.bf16 %v1724, %v1720
      %v1833 = vpack.c.bf16 %v1729, %v1725
      %v1834 = vpack.c.bf16 %v1730, %v1726
      %v1835 = vpack.c.bf16 %v1731, %v1727
      %v1836 = vpack.c.bf16 %v1732, %v1728
      %v1837 = vpack.c.bf16 %v1737, %v1733
      %v1838 = vpack.c.bf16 %v1738, %v1734
      %v1839 = vpack.c.bf16 %v1739, %v1735
      %v1840 = vpack.c.bf16 %v1740, %v1736
      %v1841 = vpack.c.bf16 %v1745, %v1741
      %v1842 = vpack.c.bf16 %v1746, %v1742
      %v1843 = vpack.c.bf16 %v1747, %v1743
      %v1844 = vpack.c.bf16 %v1748, %v1744
      %v1845 = vpack.c.bf16 %v1753, %v1749
      %v1846 = vpack.c.bf16 %v1754, %v1750
      %v1847 = vpack.c.bf16 %v1755, %v1751
      %v1848 = vpack.c.bf16 %v1756, %v1752
      %v1849 = vpack.c.bf16 %v1761, %v1757
      %v1850 = vpack.c.bf16 %v1762, %v1758
      %v1851 = vpack.c.bf16 %v1763, %v1759
      %v1852 = vpack.c.bf16 %v1764, %v1760
      %v1853 = vpack.c.bf16 %v1769, %v1765
      %v1854 = vpack.c.bf16 %v1770, %v1766
      %v1855 = vpack.c.bf16 %v1771, %v1767
      %v1856 = vpack.c.bf16 %v1772, %v1768
      %v1857 = vpack.c.bf16 %v1777, %v1773
      %v1858 = vpack.c.bf16 %v1778, %v1774
      %v1859 = vpack.c.bf16 %v1779, %v1775
      %v1860 = vpack.c.bf16 %v1780, %v1776
      %v1861 = vpack.c.bf16 %v1785, %v1781
      %v1862 = vpack.c.bf16 %v1786, %v1782
      %v1863 = vpack.c.bf16 %v1787, %v1783
      %v1864 = vpack.c.bf16 %v1788, %v1784
      %v1865 = vpack.c.bf16 %v1793, %v1789
      %v1866 = vpack.c.bf16 %v1794, %v1790
      %v1867 = vpack.c.bf16 %v1795, %v1791
      %v1868 = vpack.c.bf16 %v1796, %v1792
      %v1869 = vpack.c.bf16 %v1801, %v1797
      %v1870 = vpack.c.bf16 %v1802, %v1798
      %v1871 = vpack.c.bf16 %v1803, %v1799
      %v1872 = vpack.c.bf16 %v1804, %v1800
      %v1873 = vpack.c.bf16 %v1809, %v1805
      %v1874 = vpack.c.bf16 %v1810, %v1806
      %v1875 = vpack.c.bf16 %v1811, %v1807
      %v1876 = vpack.c.bf16 %v1812, %v1808
      %v1941 = vunpack.c.l.b16 %v1813
      %v1942 = vunpack.c.l.b16 %v1814
      %v1943 = vunpack.c.l.b16 %v1815
      %v1944 = vunpack.c.l.b16 %v1816
      %v1945 = vunpack.c.h.b16 %v1813
      %v1946 = vunpack.c.h.b16 %v1814
      %v1947 = vunpack.c.h.b16 %v1815
      %v1948 = vunpack.c.h.b16 %v1816
      %v1949 = vunpack.c.l.b16 %v1817
      %v1950 = vunpack.c.l.b16 %v1818
      %v1951 = vunpack.c.l.b16 %v1819
      %v1952 = vunpack.c.l.b16 %v1820
      %v1953 = vunpack.c.h.b16 %v1817
      %v1954 = vunpack.c.h.b16 %v1818
      %v1955 = vunpack.c.h.b16 %v1819
      %v1956 = vunpack.c.h.b16 %v1820
      %v1957 = vunpack.c.l.b16 %v1821
      %v1958 = vunpack.c.l.b16 %v1822
      %v1959 = vunpack.c.l.b16 %v1823
      %v1960 = vunpack.c.l.b16 %v1824
      %v1961 = vunpack.c.h.b16 %v1821
      %v1962 = vunpack.c.h.b16 %v1822
      %v1963 = vunpack.c.h.b16 %v1823
      %v1964 = vunpack.c.h.b16 %v1824
      %v1965 = vunpack.c.l.b16 %v1825
      %v1966 = vunpack.c.l.b16 %v1826
      %v1967 = vunpack.c.l.b16 %v1827
      %v1968 = vunpack.c.l.b16 %v1828
      %v1969 = vunpack.c.h.b16 %v1825
      %v1970 = vunpack.c.h.b16 %v1826
      %v1971 = vunpack.c.h.b16 %v1827
      %v1972 = vunpack.c.h.b16 %v1828
      %v1973 = vunpack.c.l.b16 %v1829
      %v1974 = vunpack.c.l.b16 %v1830
      %v1975 = vunpack.c.l.b16 %v1831
      %v1976 = vunpack.c.l.b16 %v1832
      %v1977 = vunpack.c.h.b16 %v1829
      %v1978 = vunpack.c.h.b16 %v1830
      %v1979 = vunpack.c.h.b16 %v1831
      %v1980 = vunpack.c.h.b16 %v1832
      %v1981 = vunpack.c.l.b16 %v1833
      %v1982 = vunpack.c.l.b16 %v1834
      %v1983 = vunpack.c.l.b16 %v1835
      %v1984 = vunpack.c.l.b16 %v1836
      %v1985 = vunpack.c.h.b16 %v1833
      %v1986 = vunpack.c.h.b16 %v1834
      %v1987 = vunpack.c.h.b16 %v1835
      %v1988 = vunpack.c.h.b16 %v1836
      %v1989 = vunpack.c.l.b16 %v1837
      %v1990 = vunpack.c.l.b16 %v1838
      %v1991 = vunpack.c.l.b16 %v1839
      %v1992 = vunpack.c.l.b16 %v1840
      %v1993 = vunpack.c.h.b16 %v1837
      %v1994 = vunpack.c.h.b16 %v1838
      %v1995 = vunpack.c.h.b16 %v1839
      %v1996 = vunpack.c.h.b16 %v1840
      %v1997 = vunpack.c.l.b16 %v1841
      %v1998 = vunpack.c.l.b16 %v1842
      %v1999 = vunpack.c.l.b16 %v1843
      %v2000 = vunpack.c.l.b16 %v1844
      %v2001 = vunpack.c.h.b16 %v1841
      %v2002 = vunpack.c.h.b16 %v1842
      %v2003 = vunpack.c.h.b16 %v1843
      %v2004 = vunpack.c.h.b16 %v1844
      %v2005 = vunpack.c.l.b16 %v1845
      %v2006 = vunpack.c.l.b16 %v1846
      %v2007 = vunpack.c.l.b16 %v1847
      %v2008 = vunpack.c.l.b16 %v1848
      %v2009 = vunpack.c.h.b16 %v1845
      %v2010 = vunpack.c.h.b16 %v1846
      %v2011 = vunpack.c.h.b16 %v1847
      %v2012 = vunpack.c.h.b16 %v1848
      %v2013 = vunpack.c.l.b16 %v1849
      %v2014 = vunpack.c.l.b16 %v1850
      %v2015 = vunpack.c.l.b16 %v1851
      %v2016 = vunpack.c.l.b16 %v1852
      %v2017 = vunpack.c.h.b16 %v1849
      %v2018 = vunpack.c.h.b16 %v1850
      %v2019 = vunpack.c.h.b16 %v1851
      %v2020 = vunpack.c.h.b16 %v1852
      %v2021 = vunpack.c.l.b16 %v1853
      %v2022 = vunpack.c.l.b16 %v1854
      %v2023 = vunpack.c.l.b16 %v1855
      %v2024 = vunpack.c.l.b16 %v1856
      %v2025 = vunpack.c.h.b16 %v1853
      %v2026 = vunpack.c.h.b16 %v1854
      %v2027 = vunpack.c.h.b16 %v1855
      %v2028 = vunpack.c.h.b16 %v1856
      %v2029 = vunpack.c.l.b16 %v1857
      %v2030 = vunpack.c.l.b16 %v1858
      %v2031 = vunpack.c.l.b16 %v1859
      %v2032 = vunpack.c.l.b16 %v1860
      %v2033 = vunpack.c.h.b16 %v1857
      %v2034 = vunpack.c.h.b16 %v1858
      %v2035 = vunpack.c.h.b16 %v1859
      %v2036 = vunpack.c.h.b16 %v1860
      %v2037 = vunpack.c.l.b16 %v1861
      %v2038 = vunpack.c.l.b16 %v1862
      %v2039 = vunpack.c.l.b16 %v1863
      %v2040 = vunpack.c.l.b16 %v1864
      %v2041 = vunpack.c.h.b16 %v1861
      %v2042 = vunpack.c.h.b16 %v1862
      %v2043 = vunpack.c.h.b16 %v1863
      %v2044 = vunpack.c.h.b16 %v1864
      %v2045 = vunpack.c.l.b16 %v1865
      %v2046 = vunpack.c.l.b16 %v1866
      %v2047 = vunpack.c.l.b16 %v1867
      %v2048 = vunpack.c.l.b16 %v1868
      %v2049 = vunpack.c.h.b16 %v1865
      %v2050 = vunpack.c.h.b16 %v1866
      %v2051 = vunpack.c.h.b16 %v1867
      %v2052 = vunpack.c.h.b16 %v1868
      %v2053 = vunpack.c.l.b16 %v1869
      %v2054 = vunpack.c.l.b16 %v1870
      %v2055 = vunpack.c.l.b16 %v1871
      %v2056 = vunpack.c.l.b16 %v1872
      %v2057 = vunpack.c.h.b16 %v1869
      %v2058 = vunpack.c.h.b16 %v1870
      %v2059 = vunpack.c.h.b16 %v1871
      %v2060 = vunpack.c.h.b16 %v1872
      %v2061 = vunpack.c.l.b16 %v1873
      %v2062 = vunpack.c.l.b16 %v1874
      %v2063 = vunpack.c.l.b16 %v1875
      %v2064 = vunpack.c.l.b16 %v1876
      %v2065 = vunpack.c.h.b16 %v1873
      %v2066 = vunpack.c.h.b16 %v1874
      %v2067 = vunpack.c.h.b16 %v1875
      %v2068 = vunpack.c.h.b16 %v1876
      %v2069 = vpack.c.b16 %v1942, %v1941
      %v2070 = vpack.c.b16 %v1944, %v1943
      %v2071 = vpack.c.b16 %v1946, %v1945
      %v2072 = vpack.c.b16 %v1948, %v1947
      %v2073 = vpack.c.b16 %v1950, %v1949
      %v2074 = vpack.c.b16 %v1952, %v1951
      %v2075 = vpack.c.b16 %v1954, %v1953
      %v2076 = vpack.c.b16 %v1956, %v1955
      %v2077 = vpack.c.b16 %v1958, %v1957
      %v2078 = vpack.c.b16 %v1960, %v1959
      %v2079 = vpack.c.b16 %v1962, %v1961
      %v2080 = vpack.c.b16 %v1964, %v1963
      %v2081 = vpack.c.b16 %v1966, %v1965
      %v2082 = vpack.c.b16 %v1968, %v1967
      %v2083 = vpack.c.b16 %v1970, %v1969
      %v2084 = vpack.c.b16 %v1972, %v1971
      %v2085 = vpack.c.b16 %v1974, %v1973
      %v2086 = vpack.c.b16 %v1976, %v1975
      %v2087 = vpack.c.b16 %v1978, %v1977
      %v2088 = vpack.c.b16 %v1980, %v1979
      %v2089 = vpack.c.b16 %v1982, %v1981
      %v2090 = vpack.c.b16 %v1984, %v1983
      %v2091 = vpack.c.b16 %v1986, %v1985
      %v2092 = vpack.c.b16 %v1988, %v1987
      %v2093 = vpack.c.b16 %v1990, %v1989
      %v2094 = vpack.c.b16 %v1992, %v1991
      %v2095 = vpack.c.b16 %v1994, %v1993
      %v2096 = vpack.c.b16 %v1996, %v1995
      %v2097 = vpack.c.b16 %v1998, %v1997
      %v2098 = vpack.c.b16 %v2000, %v1999
      %v2099 = vpack.c.b16 %v2002, %v2001
      %v2100 = vpack.c.b16 %v2004, %v2003
      %v2101 = vpack.c.b16 %v2006, %v2005
      %v2102 = vpack.c.b16 %v2008, %v2007
      %v2103 = vpack.c.b16 %v2010, %v2009
      %v2104 = vpack.c.b16 %v2012, %v2011
      %v2105 = vpack.c.b16 %v2014, %v2013
      %v2106 = vpack.c.b16 %v2016, %v2015
      %v2107 = vpack.c.b16 %v2018, %v2017
      %v2108 = vpack.c.b16 %v2020, %v2019
      %v2109 = vpack.c.b16 %v2022, %v2021
      %v2110 = vpack.c.b16 %v2024, %v2023
      %v2111 = vpack.c.b16 %v2026, %v2025
      %v2112 = vpack.c.b16 %v2028, %v2027
      %v2113 = vpack.c.b16 %v2030, %v2029
      %v2114 = vpack.c.b16 %v2032, %v2031
      %v2115 = vpack.c.b16 %v2034, %v2033
      %v2116 = vpack.c.b16 %v2036, %v2035
      %v2117 = vpack.c.b16 %v2038, %v2037
      %v2118 = vpack.c.b16 %v2040, %v2039
      %v2119 = vpack.c.b16 %v2042, %v2041
      %v2120 = vpack.c.b16 %v2044, %v2043
      %v2121 = vpack.c.b16 %v2046, %v2045
      %v2122 = vpack.c.b16 %v2048, %v2047
      %v2123 = vpack.c.b16 %v2050, %v2049
      %v2124 = vpack.c.b16 %v2052, %v2051
      %v2125 = vpack.c.b16 %v2054, %v2053
      %v2126 = vpack.c.b16 %v2056, %v2055
      %v2127 = vpack.c.b16 %v2058, %v2057
      %v2128 = vpack.c.b16 %v2060, %v2059
      %v2129 = vpack.c.b16 %v2062, %v2061
      %v2130 = vpack.c.b16 %v2064, %v2063
      %v2131 = vpack.c.b16 %v2066, %v2065
      %v2132 = vpack.c.b16 %v2068, %v2067
      %2197 = vst [vmem:[#allocation9] sm:$0xff] %v2069
      %2198 = vst [vmem:[#allocation9 + $0x8] sm:$0xff] %v2070
      %2199 = vst [vmem:[#allocation9 + $0x10] sm:$0xff] %v2071
      %2200 = vst [vmem:[#allocation9 + $0x18] sm:$0xff] %v2072
      %2201 = vst [vmem:[#allocation9 + $0x20] sm:$0xff] %v2073
      %2202 = vst [vmem:[#allocation9 + $0x28] sm:$0xff] %v2074
      %2203 = vst [vmem:[#allocation9 + $0x30] sm:$0xff] %v2075
      %2204 = vst [vmem:[#allocation9 + $0x38] sm:$0xff] %v2076
      %2205 = vst [vmem:[#allocation9 + $0x40] sm:$0xff] %v2077
      %2206 = vst [vmem:[#allocation9 + $0x48] sm:$0xff] %v2078
      %2207 = vst [vmem:[#allocation9 + $0x50] sm:$0xff] %v2079
      %2208 = vst [vmem:[#allocation9 + $0x58] sm:$0xff] %v2080
      %2209 = vst [vmem:[#allocation9 + $0x60] sm:$0xff] %v2081
      %2210 = vst [vmem:[#allocation9 + $0x68] sm:$0xff] %v2082
      %2211 = vst [vmem:[#allocation9 + $0x70] sm:$0xff] %v2083
      %2212 = vst [vmem:[#allocation9 + $0x78] sm:$0xff] %v2084
      %2213 = vst [vmem:[#allocation9 + $0x80] sm:$0xff] %v2085
      %2214 = vst [vmem:[#allocation9 + $0x88] sm:$0xff] %v2086
      %2215 = vst [vmem:[#allocation9 + $0x90] sm:$0xff] %v2087
      %2216 = vst [vmem:[#allocation9 + $0x98] sm:$0xff] %v2088
      %2217 = vst [vmem:[#allocation9 + $0xa0] sm:$0xff] %v2089
      %2218 = vst [vmem:[#allocation9 + $0xa8] sm:$0xff] %v2090
      %2219 = vst [vmem:[#allocation9 + $0xb0] sm:$0xff] %v2091
      %2220 = vst [vmem:[#allocation9 + $0xb8] sm:$0xff] %v2092
      %2221 = vst [vmem:[#allocation9 + $0xc0] sm:$0xff] %v2093
      %2222 = vst [vmem:[#allocation9 + $0xc8] sm:$0xff] %v2094
      %2223 = vst [vmem:[#allocation9 + $0xd0] sm:$0xff] %v2095
      %2224 = vst [vmem:[#allocation9 + $0xd8] sm:$0xff] %v2096
      %2225 = vst [vmem:[#allocation9 + $0xe0] sm:$0xff] %v2097
      %2226 = vst [vmem:[#allocation9 + $0xe8] sm:$0xff] %v2098
      %2227 = vst [vmem:[#allocation9 + $0xf0] sm:$0xff] %v2099
      %2228 = vst [vmem:[#allocation9 + $0xf8] sm:$0xff] %v2100
      %2229 = vst [vmem:[#allocation9 + $0x100] sm:$0xff] %v2101
      %2230 = vst [vmem:[#allocation9 + $0x108] sm:$0xff] %v2102
      %2231 = vst [vmem:[#allocation9 + $0x110] sm:$0xff] %v2103
      %2232 = vst [vmem:[#allocation9 + $0x118] sm:$0xff] %v2104
      %2233 = vst [vmem:[#allocation9 + $0x120] sm:$0xff] %v2105
      %2234 = vst [vmem:[#allocation9 + $0x128] sm:$0xff] %v2106
      %2235 = vst [vmem:[#allocation9 + $0x130] sm:$0xff] %v2107
      %2236 = vst [vmem:[#allocation9 + $0x138] sm:$0xff] %v2108
      %2237 = vst [vmem:[#allocation9 + $0x140] sm:$0xff] %v2109
      %2238 = vst [vmem:[#allocation9 + $0x148] sm:$0xff] %v2110
      %2239 = vst [vmem:[#allocation9 + $0x150] sm:$0xff] %v2111
      %2240 = vst [vmem:[#allocation9 + $0x158] sm:$0xff] %v2112
      %2241 = vst [vmem:[#allocation9 + $0x160] sm:$0xff] %v2113
      %2242 = vst [vmem:[#allocation9 + $0x168] sm:$0xff] %v2114
      %2243 = vst [vmem:[#allocation9 + $0x170] sm:$0xff] %v2115
      %2244 = vst [vmem:[#allocation9 + $0x178] sm:$0xff] %v2116
      %2245 = vst [vmem:[#allocation9 + $0x180] sm:$0xff] %v2117
      %2246 = vst [vmem:[#allocation9 + $0x188] sm:$0xff] %v2118
      %2247 = vst [vmem:[#allocation9 + $0x190] sm:$0xff] %v2119
      %2248 = vst [vmem:[#allocation9 + $0x198] sm:$0xff] %v2120
      %2249 = vst [vmem:[#allocation9 + $0x1a0] sm:$0xff] %v2121
      %2250 = vst [vmem:[#allocation9 + $0x1a8] sm:$0xff] %v2122
      %2251 = vst [vmem:[#allocation9 + $0x1b0] sm:$0xff] %v2123
      %2252 = vst [vmem:[#allocation9 + $0x1b8] sm:$0xff] %v2124
      %2253 = vst [vmem:[#allocation9 + $0x1c0] sm:$0xff] %v2125
      %2254 = vst [vmem:[#allocation9 + $0x1c8] sm:$0xff] %v2126
      %2255 = vst [vmem:[#allocation9 + $0x1d0] sm:$0xff] %v2127
      %2256 = vst [vmem:[#allocation9 + $0x1d8] sm:$0xff] %v2128
      %2257 = vst [vmem:[#allocation9 + $0x1e0] sm:$0xff] %v2129
      %2258 = vst [vmem:[#allocation9 + $0x1e8] sm:$0xff] %v2130
      %2259 = vst [vmem:[#allocation9 + $0x1f0] sm:$0xff] %v2131
      %2260 = vst [vmem:[#allocation9 + $0x1f8] sm:$0xff] %v2132
    $region33: #{tpu_custom_call.1} parent=1 // pred_fallthru
      _
    // Predicated region
    $region34: #{tpu_custom_call.1} parent=1 // pred_check
      _
    $region35: #{tpu_custom_call.1} parent=1 // pred_check_branch
      %2262 = sbr.rel (0) target = $region37
    $region36: #{tpu_custom_call.1} parent=1 // pred_region
      %s2264 = ssub.s32 8192, 8192
      %2265 = vsyncadd [#allocation5], %s2264
      %s2266 = sshll.u32 [#allocation9], 4
      %s2267 = int_to_ptr.vmem [resolvable:$true] %s2266
      %2272 = dma.vmem_to_hbm [thread:$0]  %s2267, 8192, %s3, [#allocation5], 256, 256, 16
    $region37: #{tpu_custom_call.1} parent=1 // pred_fallthru
      _
    // Predicated region
    $region38: #{tpu_custom_call.1} parent=1 // pred_check
      _
    $region39: #{tpu_custom_call.1} parent=1 // pred_check_branch
      %2274 = sbr.rel (0) target = $region41
    $region40: #{tpu_custom_call.1} parent=1 // pred_region
      %2275 = dma.done [#allocation5], 8192
    $region41: #{tpu_custom_call.1} parent=1 // pred_fallthru
      _
    %2276 = vsyncpa [#allocation4], 1
    %2277 = vsyncpa [#allocation7], 1
    %2278 = vsyncpa [#allocation5], 1

</llo_original>
